<compile_context>
chip_gen: v6e
topology: v6e:2x2x1
jax: 0.10.0
libtpu: 0.0.40
codegen_flags: <defaults>
</compile_context>

<pallas_src>
import math

import jax
import jax.numpy as jnp
from jax.experimental import pallas as pl
from jax.experimental.pallas import tpu as pltpu


def _softplus_beta100(h):
    """PyTorch F.softplus(x, beta=100, threshold=20) without overflow."""
    beta = 100.0
    z = beta * h
    # Clamp the argument of exp so the unselected branch never produces inf.
    sp = jnp.log1p(jnp.exp(jnp.minimum(z, 20.0))) / beta
    return jnp.where(z > 20.0, h, sp)


def _make_mlp_kernel(num_layers, geom_init):
    def kernel(*refs):
        x_ref = refs[0]                              # [dim_in, n_tile]
        param_refs = refs[1:1 + 2 * num_layers]      # W_l [out,in], b_l [out,1]
        o_ref = refs[1 + 2 * num_layers]             # [dim_out, n_tile]

        h = x_ref[...].astype(jnp.float32)
        for l in range(num_layers):
            w = param_refs[2 * l][...].astype(jnp.float32)        # [out, in]
            b = param_refs[2 * l + 1][...].astype(jnp.float32)    # [out, 1]
            h = jnp.dot(w, h, preferred_element_type=jnp.float32) + b
            if l != num_layers - 1:
                if geom_init:
                    h = _softplus_beta100(h)
                else:
                    h = jnp.maximum(h, 0.0)  # ReLU
        o_ref[...] = h.astype(o_ref.dtype)

    return kernel


def mlp_forward(x, weights, biases, *, geom_init=False, n_tile=4096):
    """Run the fused MLP Pallas kernel.

    x:       [N, dim_in]                      (PyTorch nn.Linear convention)
    weights: list of [out_dim, in_dim] arrays (PyTorch orientation)
    biases:  list of [out_dim, 1] arrays
    returns: [N, dim_out]
    """
    N, dim_in = x.shape
    num_layers = len(weights)
    dim_out = weights[-1].shape[0]

    # Pick a lane-aligned tile, never larger than (padded) N.
    n_tile = max(128, min(n_tile, pl.cdiv(N, 128) * 128))
    n_tile = (n_tile // 128) * 128
    n_pad = pl.cdiv(N, n_tile) * n_tile
    grid = (n_pad // n_tile,)

    # Lane-dense layout: [dim_in, N], padded along N.  The transpose/pad are
    # cheap XLA layout plumbing outside the kernel.
    xt = x.T
    if n_pad != N:
        xt = jnp.pad(xt, ((0, 0), (0, n_pad - N)))

    kernel = _make_mlp_kernel(num_layers, geom_init)

    in_specs = [pl.BlockSpec((dim_in, n_tile), lambda i: (0, i))]
    args = [xt]
    for w, b in zip(weights, biases):
        # Full-array blocks, constant index_map -> DMA'd once, resident.
        in_specs.append(pl.BlockSpec(w.shape, lambda i: (0, 0)))
        in_specs.append(pl.BlockSpec(b.shape, lambda i: (0, 0)))
        args.append(w)
        args.append(b)

    out_spec = pl.BlockSpec((dim_out, n_tile), lambda i: (0, i))

    out_t = pl.pallas_call(
        kernel,
        out_shape=jax.ShapeDtypeStruct((dim_out, n_pad), x.dtype),
        grid_spec=pltpu.PrefetchScalarGridSpec(
            num_scalar_prefetch=0,
            grid=grid,
            in_specs=in_specs,
            out_specs=out_spec,
        ),
        compiler_params=pltpu.CompilerParams(
            dimension_semantics=("parallel",),
            vmem_limit_bytes=32 * 1024 * 1024,
        ),
    )(*args)

    return out_t[:, :N].T


def init_mlp_params(key, dim_in, dim_out, dim_hidden, num_layers,
                    bias=True, geom_init=False):
    """Deterministic parameter init mirroring the PyTorch module's shapes.

    Returns weights as [out_dim, in_dim] (PyTorch orientation) and biases as
    [out_dim, 1].
    """
    weights, biases = [], []
    for l in range(num_layers):
        in_dim = dim_in if l == 0 else dim_hidden
        out_dim = dim_out if l == num_layers - 1 else dim_hidden
        key, wk, bk = jax.random.split(key, 3)
        if geom_init:
            if l == num_layers - 1:
                w = (math.sqrt(math.pi) / math.sqrt(in_dim)
                     + 1e-4 * jax.random.normal(wk, (out_dim, in_dim), jnp.float32))
                b = jnp.full((out_dim,), -0.5, jnp.float32)
            elif l == 0:
                std = math.sqrt(2.0) / math.sqrt(out_dim)
                w_first = std * jax.random.normal(wk, (out_dim, min(3, in_dim)),
                                                  jnp.float32)
                w = jnp.concatenate(
                    [w_first, jnp.zeros((out_dim, in_dim - w_first.shape[1]),
                                        jnp.float32)], axis=1)
                b = jnp.zeros((out_dim,), jnp.float32)
            else:
                std = math.sqrt(2.0) / math.sqrt(out_dim)
                w = std * jax.random.normal(wk, (out_dim, in_dim), jnp.float32)
                b = jnp.zeros((out_dim,), jnp.float32)
        else:
            # PyTorch nn.Linear default: U(-1/sqrt(fan_in), 1/sqrt(fan_in))
            bound = 1.0 / math.sqrt(in_dim)
            w = jax.random.uniform(wk, (out_dim, in_dim), jnp.float32,
                                   -bound, bound)
            b = jax.random.uniform(bk, (out_dim,), jnp.float32, -bound, bound)
        if not bias:
            b = jnp.zeros((out_dim,), jnp.float32)
        weights.append(w)            # [out_dim, in_dim]
        biases.append(b[:, None])    # [out_dim, 1]
    # TODO(synk): weight_norm reparameterization not implemented (inference
    # forward is equivalent to the plain Linear once weights are materialized).
    return weights, biases


def mlp_reference(x, weights, biases, geom_init=False):
    h = x.astype(jnp.float32)
    n = len(weights)
    for l, (w, b) in enumerate(zip(weights, biases)):
        h = h @ w.T + b[:, 0]
        if l != n - 1:
            if geom_init:
                h = _softplus_beta100(h)
            else:
                h = jnp.maximum(h, 0.0)
    return h.astype(x.dtype)


if __name__ == "__main__":
    # SDF-style MLP: dim_in=4, dim_hidden=32, dim_out=3, num_layers=3.
    # N=2000 deliberately not a multiple of the tile to exercise tail padding;
    # n_tile=1024 -> grid=2 so both v7x TensorCores get work.
    key = jax.random.PRNGKey(0)
    N, dim_in, dim_hidden, dim_out, num_layers = 2000, 4, 32, 3, 3

    key, xk = jax.random.split(key)
    x = jax.random.normal(xk, (N, dim_in), jnp.float32)

    for geom_init in (False, True):
        key, pk = jax.random.split(key)
        weights, biases = init_mlp_params(pk, dim_in, dim_out, dim_hidden,
                                          num_layers, bias=True,
                                          geom_init=geom_init)

        out = mlp_forward(x, weights, biases, geom_init=geom_init, n_tile=1024)
        out = jax.block_until_ready(out)

        ref = mlp_reference(x, weights, biases, geom_init=geom_init)
        assert out.shape == (N, dim_out)
        assert jnp.allclose(out, ref, atol=1e-4, rtol=1e-4), \
            f"geom_init={geom_init}: max err {jnp.max(jnp.abs(out - ref))}"

    print("KERNEL_OK")
</pallas_src>

<mosaic_0001>
module attributes {stable_mosaic.version = 11 : i64} {
  func.func @kernel(%arg0: i32, %arg1: memref<4x1024xf32, #tpu.memory_space<vmem>>, %arg2: memref<32x4xf32, #tpu.memory_space<vmem>>, %arg3: memref<32x1xf32, #tpu.memory_space<vmem>>, %arg4: memref<32x32xf32, #tpu.memory_space<vmem>>, %arg5: memref<32x1xf32, #tpu.memory_space<vmem>>, %arg6: memref<3x32xf32, #tpu.memory_space<vmem>>, %arg7: memref<3x1xf32, #tpu.memory_space<vmem>>, %arg8: memref<3x1024xf32, #tpu.memory_space<vmem>>) attributes {dimension_semantics = [#tpu.dimension_semantics<parallel>], iteration_bounds = array<i64: 2>, scalar_prefetch = 0 : i64, scratch_operands = 0 : i64, tpu.core_type = #tpu.core_type<tc>, window_params = [{transform_indices = @transform_0, window_bounds = array<i64: 4, 1024>}, {pipeline_mode = #tpu.pipeline_mode<synchronous>, transform_indices = @transform_1, window_bounds = array<i64: 32, 4>}, {pipeline_mode = #tpu.pipeline_mode<synchronous>, transform_indices = @transform_2, window_bounds = array<i64: 32, 1>}, {pipeline_mode = #tpu.pipeline_mode<synchronous>, transform_indices = @transform_3, window_bounds = array<i64: 32, 32>}, {pipeline_mode = #tpu.pipeline_mode<synchronous>, transform_indices = @transform_4, window_bounds = array<i64: 32, 1>}, {pipeline_mode = #tpu.pipeline_mode<synchronous>, transform_indices = @transform_5, window_bounds = array<i64: 3, 32>}, {pipeline_mode = #tpu.pipeline_mode<synchronous>, transform_indices = @transform_6, window_bounds = array<i64: 3, 1>}, {transform_indices = @transform_7, window_bounds = array<i64: 3, 1024>}]} {
    %c0 = arith.constant 0 : index
    %c0_0 = arith.constant 0 : index
    %0 = vector.load %arg1[%c0, %c0_0] : memref<4x1024xf32, #tpu.memory_space<vmem>>, vector<4x1024xf32>
    %c0_1 = arith.constant 0 : index
    %c0_2 = arith.constant 0 : index
    %1 = vector.load %arg2[%c0_1, %c0_2] : memref<32x4xf32, #tpu.memory_space<vmem>>, vector<32x4xf32>
    %c0_3 = arith.constant 0 : index
    %c0_4 = arith.constant 0 : index
    %2 = vector.load %arg3[%c0_3, %c0_4] : memref<32x1xf32, #tpu.memory_space<vmem>>, vector<32x1xf32>
    %cst = arith.constant dense<0.000000e+00> : vector<32x1024xf32>
    %3 = tpu.matmul %1, %0, %cst {dimension_numbers = #tpu.dot_dimension_numbers<[1], [0], [0], [1], [0, 0, 1, 1], [], []>} : vector<32x4xf32>, vector<4x1024xf32>, vector<32x1024xf32> -> vector<32x1024xf32>
    %4 = vector.broadcast %2 : vector<32x1xf32> to vector<32x1024xf32>
    %5 = arith.addf %3, %4 : vector<32x1024xf32>
    %cst_5 = arith.constant 0.000000e+00 : f32
    %6 = vector.broadcast %cst_5 : f32 to vector<32x1024xf32>
    %7 = arith.maximumf %5, %6 : vector<32x1024xf32>
    %c0_6 = arith.constant 0 : index
    %c0_7 = arith.constant 0 : index
    %8 = vector.load %arg4[%c0_6, %c0_7] : memref<32x32xf32, #tpu.memory_space<vmem>>, vector<32x32xf32>
    %c0_8 = arith.constant 0 : index
    %c0_9 = arith.constant 0 : index
    %9 = vector.load %arg5[%c0_8, %c0_9] : memref<32x1xf32, #tpu.memory_space<vmem>>, vector<32x1xf32>
    %cst_10 = arith.constant dense<0.000000e+00> : vector<32x1024xf32>
    %10 = tpu.matmul %8, %7, %cst_10 {dimension_numbers = #tpu.dot_dimension_numbers<[1], [0], [0], [1], [0, 0, 1, 1], [], []>} : vector<32x32xf32>, vector<32x1024xf32>, vector<32x1024xf32> -> vector<32x1024xf32>
    %11 = vector.broadcast %9 : vector<32x1xf32> to vector<32x1024xf32>
    %12 = arith.addf %10, %11 : vector<32x1024xf32>
    %cst_11 = arith.constant 0.000000e+00 : f32
    %13 = vector.broadcast %cst_11 : f32 to vector<32x1024xf32>
    %14 = arith.maximumf %12, %13 : vector<32x1024xf32>
    %c0_12 = arith.constant 0 : index
    %c0_13 = arith.constant 0 : index
    %15 = vector.load %arg6[%c0_12, %c0_13] : memref<3x32xf32, #tpu.memory_space<vmem>>, vector<3x32xf32>
    %c0_14 = arith.constant 0 : index
    %c0_15 = arith.constant 0 : index
    %16 = vector.load %arg7[%c0_14, %c0_15] : memref<3x1xf32, #tpu.memory_space<vmem>>, vector<3x1xf32>
    %cst_16 = arith.constant dense<0.000000e+00> : vector<3x1024xf32>
    %17 = tpu.matmul %15, %14, %cst_16 {dimension_numbers = #tpu.dot_dimension_numbers<[1], [0], [0], [1], [0, 0, 1, 1], [], []>} : vector<3x32xf32>, vector<32x1024xf32>, vector<3x1024xf32> -> vector<3x1024xf32>
    %18 = vector.broadcast %16 : vector<3x1xf32> to vector<3x1024xf32>
    %19 = arith.addf %17, %18 : vector<3x1024xf32>
    %c0_17 = arith.constant 0 : index
    %c0_18 = arith.constant 0 : index
    %20 = vector.load %arg8[%c0_17, %c0_18] : memref<3x1024xf32, #tpu.memory_space<vmem>>, vector<3x1024xf32>
    tpu.vector_store %arg8[%c0_17, %c0_18], %19 {strides = array<i32>} : memref<3x1024xf32, #tpu.memory_space<vmem>>, vector<3x1024xf32>,
    return
  }
  func.func @transform_0(%arg0: i32) -> (i32, i32) {
    %c0_i32 = arith.constant 0 : i32
    %c0_i32_0 = arith.constant 0 : i32
    return %c0_i32, %arg0 : i32, i32
  }
  func.func @transform_1(%arg0: i32) -> (i32, i32) {
    %c0_i32 = arith.constant 0 : i32
    %c0_i32_0 = arith.constant 0 : i32
    %c0_i32_1 = arith.constant 0 : i32
    return %c0_i32, %c0_i32_0 : i32, i32
  }
  func.func @transform_2(%arg0: i32) -> (i32, i32) {
    %c0_i32 = arith.constant 0 : i32
    %c0_i32_0 = arith.constant 0 : i32
    %c0_i32_1 = arith.constant 0 : i32
    return %c0_i32, %c0_i32_0 : i32, i32
  }
  func.func @transform_3(%arg0: i32) -> (i32, i32) {
    %c0_i32 = arith.constant 0 : i32
    %c0_i32_0 = arith.constant 0 : i32
    %c0_i32_1 = arith.constant 0 : i32
    return %c0_i32, %c0_i32_0 : i32, i32
  }
  func.func @transform_4(%arg0: i32) -> (i32, i32) {
    %c0_i32 = arith.constant 0 : i32
    %c0_i32_0 = arith.constant 0 : i32
    %c0_i32_1 = arith.constant 0 : i32
    return %c0_i32, %c0_i32_0 : i32, i32
  }
  func.func @transform_5(%arg0: i32) -> (i32, i32) {
    %c0_i32 = arith.constant 0 : i32
    %c0_i32_0 = arith.constant 0 : i32
    %c0_i32_1 = arith.constant 0 : i32
    return %c0_i32, %c0_i32_0 : i32, i32
  }
  func.func @transform_6(%arg0: i32) -> (i32, i32) {
    %c0_i32 = arith.constant 0 : i32
    %c0_i32_0 = arith.constant 0 : i32
    %c0_i32_1 = arith.constant 0 : i32
    return %c0_i32, %c0_i32_0 : i32, i32
  }
  func.func @transform_7(%arg0: i32) -> (i32, i32) {
    %c0_i32 = arith.constant 0 : i32
    %c0_i32_0 = arith.constant 0 : i32
    return %c0_i32, %arg0 : i32, i32
  }
}

</mosaic_0001>

<llo_original>
// kernel: tpu_custom_call.1
$region0: #{tpu_custom_call.1}
  #allocation0 [shape = 'u32[]', space=smem, size = 0x4, offset = 0x4, fixed_abs, tag = 'smem constant byte address 0x4 - core index']
  #allocation1 [shape = 'u32[144,128]{1,0:T(1,128)}', space=vmem, size = 0x12000, scoped, tag = 'internal scratch']
  %s0 = inlined_call_operand.vmem [shape: f32[4,2048], index: 0, kind: input, shape index: {}]
  %s1 = inlined_call_operand.vmem [shape: f32[32,4], index: 1, kind: input, shape index: {}]
  %s2 = inlined_call_operand.vmem [shape: f32[32,1], index: 2, kind: input, shape index: {}]
  %s3 = inlined_call_operand.vmem [shape: f32[32,32], index: 3, kind: input, shape index: {}]
  %s4 = inlined_call_operand.vmem [shape: f32[32,1], index: 4, kind: input, shape index: {}]
  %s5 = inlined_call_operand.vmem [shape: f32[3,32], index: 5, kind: input, shape index: {}]
  %s6 = inlined_call_operand.vmem [shape: f32[3,1], index: 6, kind: input, shape index: {}]
  %s7 = inlined_call_operand.hbm [shape: f32[3,2048], index: 7, kind: output, shape index: {}]
  %s8 = sld [smem:[#allocation0]]
  $region61: #{tpu_custom_call.1} parent=0
    _
  %s10 = ssub.s32 1, %s8
  %s11 = scalar_select 0, %s10, %s8
  $region1: #{tpu_custom_call.1} parent=0
    #allocation2 [shape = 'u8[32768]{0}', space=vmem, size = 0x8000, scoped, tag = 'output window, operand 0']
    #allocation3 [shape = 's32[2]{0}', space=sflag, size = 0x8, scoped, tag = 'scoped memory for tpu_custom_call.1']
    %12 = vsyncpa [#allocation3], 0
    %s13 = scalar_lea.sflag [#allocation3], 1
    %14 = vsyncpa %s13, 0
    loop: start=0, step=1, limit=4
    $region2: #{tpu_custom_call.1} parent=1 // loop_pre_header
      _
    $region3: #{tpu_custom_call.1} parent=1 // loop_header
      %s16 = sphi 0, %s20
      %p17 = scmp.ge.s32.totalorder %s16, 4
      %s26 = sphi 0, %s28
      %s29 = sphi 0, %s26
      %s30 = sphi 0, %s29
      %s46 = sphi 0, %s30
      %s50 = sphi 0, %s50
      %s52 = sphi 0, %s50
      %s53 = sphi 0, %s52
      %s67 = sphi 0, %s53
      %s71 = sphi 0, %s71
      %s73 = sphi 0, %s71
      %s74 = sphi 0, %s73
      %s88 = sphi 0, %s74
      %s92 = sphi 0, %s92
      %s94 = sphi 0, %s92
      %s95 = sphi 0, %s94
      %s109 = sphi 0, %s95
      %s113 = sphi 0, %s113
      %s115 = sphi 0, %s113
      %s116 = sphi 0, %s115
      %s130 = sphi 0, %s116
      %s134 = sphi 0, %s134
      %s136 = sphi 0, %s134
      %s137 = sphi 0, %s136
      %s151 = sphi 0, %s137
      %s155 = sphi 0, %s155
      %s157 = sphi 0, %s155
      %s158 = sphi 0, %s157
      %s172 = sphi 0, %s158
      %s178 = sphi 0, %s180
      %s181 = sphi 0, %s178
      %s182 = sphi 0, %s181
      %s198 = sphi 0, %s182
    $region4: #{tpu_custom_call.1} parent=1 // loop_header_branch
      %19 = sbr.rel (%p17) target = $region8
    $region5: #{tpu_custom_call.1} parent=1 // loop_body
      %s21 = ssub.s32 %s16, 1
      %s22 = ssub.s32 %s16, 2
      %s23 = sadd.s32 %s16, 1
      %s24 = ssub.s32 %s16, %s23
      %p25 = scmp.eq.s32.totalorder %s24, 0
      %s27 = sadd.s32 %s26, 1
      %s28 = scalar_select %p25, %s26, %s27
      %p31 = pneg %p25
      %p32 = scmp.eq.s32.totalorder %s16, 1
      %p33 = por %p31, %p32
      %p34 = scmp.ne.s32.totalorder %s26, %s29
      %p35 = scmp.eq.s32.totalorder %s16, 0
      %p36 = por %p34, %p35
      %p37 = scmp.ne.s32.totalorder %s26, %s29
      %p38 = scmp.eq.s32.totalorder %s21, 1
      %p39 = por %p37, %p38
      %p40 = scmp.ne.s32.totalorder %s29, %s30
      %p41 = scmp.eq.s32.totalorder %s21, 0
      %p42 = por %p40, %p41
      %p43 = scmp.ne.s32.totalorder %s29, %s30
      %p44 = scmp.eq.s32.totalorder %s22, 1
      %p45 = por %p43, %p44
      %p47 = scmp.ne.s32.totalorder %s30, %s46
      %p48 = scmp.eq.s32.totalorder %s22, 0
      %p49 = por %p47, %p48
      %s51 = sadd.s32 %s50, 1
      %p54 = scmp.eq.s32.totalorder %s16, 1
      %p55 = scmp.ne.s32.totalorder %s50, %s52
      %p56 = scmp.eq.s32.totalorder %s16, 0
      %p57 = por %p55, %p56
      %p58 = scmp.ne.s32.totalorder %s50, %s52
      %p59 = scmp.eq.s32.totalorder %s21, 1
      %p60 = por %p58, %p59
      %p61 = scmp.ne.s32.totalorder %s52, %s53
      %p62 = scmp.eq.s32.totalorder %s21, 0
      %p63 = por %p61, %p62
      %p64 = scmp.ne.s32.totalorder %s52, %s53
      %p65 = scmp.eq.s32.totalorder %s22, 1
      %p66 = por %p64, %p65
      %p68 = scmp.ne.s32.totalorder %s53, %s67
      %p69 = scmp.eq.s32.totalorder %s22, 0
      %p70 = por %p68, %p69
      %s72 = sadd.s32 %s71, 1
      %p75 = scmp.eq.s32.totalorder %s16, 1
      %p76 = scmp.ne.s32.totalorder %s71, %s73
      %p77 = scmp.eq.s32.totalorder %s16, 0
      %p78 = por %p76, %p77
      %p79 = scmp.ne.s32.totalorder %s71, %s73
      %p80 = scmp.eq.s32.totalorder %s21, 1
      %p81 = por %p79, %p80
      %p82 = scmp.ne.s32.totalorder %s73, %s74
      %p83 = scmp.eq.s32.totalorder %s21, 0
      %p84 = por %p82, %p83
      %p85 = scmp.ne.s32.totalorder %s73, %s74
      %p86 = scmp.eq.s32.totalorder %s22, 1
      %p87 = por %p85, %p86
      %p89 = scmp.ne.s32.totalorder %s74, %s88
      %p90 = scmp.eq.s32.totalorder %s22, 0
      %p91 = por %p89, %p90
      %s93 = sadd.s32 %s92, 1
      %p96 = scmp.eq.s32.totalorder %s16, 1
      %p97 = scmp.ne.s32.totalorder %s92, %s94
      %p98 = scmp.eq.s32.totalorder %s16, 0
      %p99 = por %p97, %p98
      %p100 = scmp.ne.s32.totalorder %s92, %s94
      %p101 = scmp.eq.s32.totalorder %s21, 1
      %p102 = por %p100, %p101
      %p103 = scmp.ne.s32.totalorder %s94, %s95
      %p104 = scmp.eq.s32.totalorder %s21, 0
      %p105 = por %p103, %p104
      %p106 = scmp.ne.s32.totalorder %s94, %s95
      %p107 = scmp.eq.s32.totalorder %s22, 1
      %p108 = por %p106, %p107
      %p110 = scmp.ne.s32.totalorder %s95, %s109
      %p111 = scmp.eq.s32.totalorder %s22, 0
      %p112 = por %p110, %p111
      %s114 = sadd.s32 %s113, 1
      %p117 = scmp.eq.s32.totalorder %s16, 1
      %p118 = scmp.ne.s32.totalorder %s113, %s115
      %p119 = scmp.eq.s32.totalorder %s16, 0
      %p120 = por %p118, %p119
      %p121 = scmp.ne.s32.totalorder %s113, %s115
      %p122 = scmp.eq.s32.totalorder %s21, 1
      %p123 = por %p121, %p122
      %p124 = scmp.ne.s32.totalorder %s115, %s116
      %p125 = scmp.eq.s32.totalorder %s21, 0
      %p126 = por %p124, %p125
      %p127 = scmp.ne.s32.totalorder %s115, %s116
      %p128 = scmp.eq.s32.totalorder %s22, 1
      %p129 = por %p127, %p128
      %p131 = scmp.ne.s32.totalorder %s116, %s130
      %p132 = scmp.eq.s32.totalorder %s22, 0
      %p133 = por %p131, %p132
      %s135 = sadd.s32 %s134, 1
      %p138 = scmp.eq.s32.totalorder %s16, 1
      %p139 = scmp.ne.s32.totalorder %s134, %s136
      %p140 = scmp.eq.s32.totalorder %s16, 0
      %p141 = por %p139, %p140
      %p142 = scmp.ne.s32.totalorder %s134, %s136
      %p143 = scmp.eq.s32.totalorder %s21, 1
      %p144 = por %p142, %p143
      %p145 = scmp.ne.s32.totalorder %s136, %s137
      %p146 = scmp.eq.s32.totalorder %s21, 0
      %p147 = por %p145, %p146
      %p148 = scmp.ne.s32.totalorder %s136, %s137
      %p149 = scmp.eq.s32.totalorder %s22, 1
      %p150 = por %p148, %p149
      %p152 = scmp.ne.s32.totalorder %s137, %s151
      %p153 = scmp.eq.s32.totalorder %s22, 0
      %p154 = por %p152, %p153
      %s156 = sadd.s32 %s155, 1
      %p159 = scmp.eq.s32.totalorder %s16, 1
      %p160 = scmp.ne.s32.totalorder %s155, %s157
      %p161 = scmp.eq.s32.totalorder %s16, 0
      %p162 = por %p160, %p161
      %p163 = scmp.ne.s32.totalorder %s155, %s157
      %p164 = scmp.eq.s32.totalorder %s21, 1
      %p165 = por %p163, %p164
      %p166 = scmp.ne.s32.totalorder %s157, %s158
      %p167 = scmp.eq.s32.totalorder %s21, 0
      %p168 = por %p166, %p167
      %p169 = scmp.ne.s32.totalorder %s157, %s158
      %p170 = scmp.eq.s32.totalorder %s22, 1
      %p171 = por %p169, %p170
      %p173 = scmp.ne.s32.totalorder %s158, %s172
      %p174 = scmp.eq.s32.totalorder %s22, 0
      %p175 = por %p173, %p174
      %s176 = ssub.s32 %s16, %s23
      %p177 = scmp.eq.s32.totalorder %s176, 0
      %s179 = sadd.s32 %s178, 1
      %s180 = scalar_select %p177, %s178, %s179
      %p183 = pneg %p177
      %p184 = scmp.eq.s32.totalorder %s16, 1
      %p185 = por %p183, %p184
      %p186 = scmp.ne.s32.totalorder %s178, %s181
      %p187 = scmp.eq.s32.totalorder %s16, 0
      %p188 = por %p186, %p187
      %p189 = scmp.ne.s32.totalorder %s178, %s181
      %p190 = scmp.eq.s32.totalorder %s21, 1
      %p191 = por %p189, %p190
      %p192 = scmp.ne.s32.totalorder %s181, %s182
      %p193 = scmp.eq.s32.totalorder %s21, 0
      %p194 = por %p192, %p193
      %p195 = scmp.ne.s32.totalorder %s181, %s182
      %p196 = scmp.eq.s32.totalorder %s22, 1
      %p197 = por %p195, %p196
      %p199 = scmp.ne.s32.totalorder %s182, %s198
      %p200 = scmp.eq.s32.totalorder %s22, 0
      %p201 = por %p199, %p200
      %p202 = scmp.le.s32.totalorder 1, %s16
      %p203 = scmp.lt.s32.totalorder %s16, 3
      %p204 = pnand %p202, %p203
      %p205 = pneg %p204
      // Predicated region
      $region9: #{tpu_custom_call.1} parent=5 // pred_check
        _
      $region10: #{tpu_custom_call.1} parent=5 // pred_check_branch
        %207 = sbr.rel (%p204) target = $region12
      $region11: #{tpu_custom_call.1} parent=5 // pred_region
        %s208 = ssub.s32 %s16, 1
        // Predicated region
        $region13: #{tpu_custom_call.1} parent=11 // pred_check
          %p209 = pneg %p63
        $region14: #{tpu_custom_call.1} parent=11 // pred_check_branch
          %211 = sbr.rel (%p209) target = $region16
        $region15: #{tpu_custom_call.1} parent=11 // pred_region
          _
        $region16: #{tpu_custom_call.1} parent=11 // pred_fallthru
          _
        // Predicated region
        $region17: #{tpu_custom_call.1} parent=11 // pred_check
          %p212 = pneg %p84
        $region18: #{tpu_custom_call.1} parent=11 // pred_check_branch
          %214 = sbr.rel (%p212) target = $region20
        $region19: #{tpu_custom_call.1} parent=11 // pred_region
          _
        $region20: #{tpu_custom_call.1} parent=11 // pred_fallthru
          _
        // Predicated region
        $region21: #{tpu_custom_call.1} parent=11 // pred_check
          %p215 = pneg %p105
        $region22: #{tpu_custom_call.1} parent=11 // pred_check_branch
          %217 = sbr.rel (%p215) target = $region24
        $region23: #{tpu_custom_call.1} parent=11 // pred_region
          _
        $region24: #{tpu_custom_call.1} parent=11 // pred_fallthru
          _
        // Predicated region
        $region25: #{tpu_custom_call.1} parent=11 // pred_check
          %p218 = pneg %p126
        $region26: #{tpu_custom_call.1} parent=11 // pred_check_branch
          %220 = sbr.rel (%p218) target = $region28
        $region27: #{tpu_custom_call.1} parent=11 // pred_region
          _
        $region28: #{tpu_custom_call.1} parent=11 // pred_fallthru
          _
        // Predicated region
        $region29: #{tpu_custom_call.1} parent=11 // pred_check
          %p221 = pneg %p147
        $region30: #{tpu_custom_call.1} parent=11 // pred_check_branch
          %223 = sbr.rel (%p221) target = $region32
        $region31: #{tpu_custom_call.1} parent=11 // pred_region
          _
        $region32: #{tpu_custom_call.1} parent=11 // pred_fallthru
          _
        // Predicated region
        $region33: #{tpu_custom_call.1} parent=11 // pred_check
          %p224 = pneg %p168
        $region34: #{tpu_custom_call.1} parent=11 // pred_check_branch
          %226 = sbr.rel (%p224) target = $region36
        $region35: #{tpu_custom_call.1} parent=11 // pred_region
          _
        $region36: #{tpu_custom_call.1} parent=11 // pred_fallthru
          _
      $region12: #{tpu_custom_call.1} parent=5 // pred_fallthru
        _
      %p227 = scmp.lt.s32.totalorder %s16, 2
      // Predicated region
      $region37: #{tpu_custom_call.1} parent=5 // pred_check
        %p228 = pneg %p227
      $region38: #{tpu_custom_call.1} parent=5 // pred_check_branch
        %230 = sbr.rel (%p228) target = $region40
      $region39: #{tpu_custom_call.1} parent=5 // pred_region
        // Predicated region
        $region41: #{tpu_custom_call.1} parent=39 // pred_check
          %p231 = pneg %p36
        $region42: #{tpu_custom_call.1} parent=39 // pred_check_branch
          %233 = sbr.rel (%p231) target = $region44
        $region43: #{tpu_custom_call.1} parent=39 // pred_region
          %s234 = smul.u32 8, %s16
          %p235 = scmp.lt.s32.totalorder %s234, 15
          %s236 = scalar_select %p235, %s234, 15
          %s237 = smul.addr %s236, 4
          %s238 = scalar_lea.vmem %s0, %s237
          %s239 = smul.u32 8, %s16
        $region44: #{tpu_custom_call.1} parent=39 // pred_fallthru
          _
      $region40: #{tpu_custom_call.1} parent=5 // pred_fallthru
        _
      %p240 = scmp.le.s32.totalorder 1, %s16
      %p241 = scmp.lt.s32.totalorder %s16, 3
      %p242 = pnand %p240, %p241
      %p243 = pneg %p242
      // Predicated region
      $region45: #{tpu_custom_call.1} parent=5 // pred_check
        _
      $region46: #{tpu_custom_call.1} parent=5 // pred_check_branch
        %245 = sbr.rel (%p242) target = $region48
      $region47: #{tpu_custom_call.1} parent=5 // pred_region
        %s246 = ssub.s32 %s16, 1
        %s247 = smul.u32 8, %s21
        %p248 = scmp.lt.s32.totalorder %s247, 15
        %s249 = scalar_select %p248, %s247, 15
        %s250 = smul.addr %s249, 4
        %s251 = scalar_lea.vmem %s0, %s250
        %p252 = pneg %p42
        %p253 = pneg %p39
        %p254 = pneg %p63
        %p255 = pneg %p60
        %p256 = pneg %p84
        %p257 = pneg %p81
        %p258 = pneg %p105
        %p259 = pneg %p102
        %p260 = pneg %p126
        %p261 = pneg %p123
        %p262 = pneg %p147
        %p263 = pneg %p144
        %p264 = pneg %p168
        %p265 = pneg %p165
        %p266 = pneg %p194
        %p267 = pneg %p191
        %s268 = sand.u32 %s181, 1
        %s269 = scalar_lea.sflag [#allocation3], %s268
        %s270 = sand.u32 %s181, 1
        %s271 = smul.addr %s270, 32
        %s272 = scalar_lea.vmem [#allocation2], %s271
        %s273 = smul.u32 8, %s21
        %p274 = scmp.lt.s32.totalorder %s273, 15
        %s275 = scalar_select %p274, %s273, 15
        %s276 = smul.addr %s275, 4
        %s277 = scalar_lea.vmem %s0, %s276
        %s278 = smul.u32 8, %s21
        %s279 = smul.u32 8, %s21
        %v280 = vld [vmem:[%s277] sm:$0xff]
        %v281 = vld [vmem:[%s277 + $0x8] sm:$0xff]
        %v282 = vld [vmem:[%s277 + $0x10] sm:$0xff]
        %v283 = vld [vmem:[%s277 + $0x18] sm:$0xff]
        %v284 = vld [vmem:[%s1] sm:$0xff]
        %v285 = vld [vmem:[%s1 + $0x8] sm:$0xff]
        %v286 = vld [vmem:[%s1 + $0x10] sm:$0xff]
        %v287 = vld [vmem:[%s1 + $0x18] sm:$0xff]
        %v288 = vld [vmem:[%s2] sm:$0xff]
        %v289 = vld [vmem:[%s2 + $0x8] sm:$0xff]
        %v290 = vld [vmem:[%s2 + $0x10] sm:$0xff]
        %v291 = vld [vmem:[%s2 + $0x18] sm:$0xff]
        %293 = vset.pattern.permute.xlu0 0
        %294 = vperm.xlu0 %293, %v288
        %v295 = vpop.permute.xlu0 %294
        %298 = vset.pattern.permute.xlu0 0
        %299 = vperm.xlu0 %298, %v289
        %v300 = vpop.permute.xlu0 %299
        %303 = vset.pattern.permute.xlu0 0
        %304 = vperm.xlu0 %303, %v290
        %v305 = vpop.permute.xlu0 %304
        %308 = vset.pattern.permute.xlu0 0
        %309 = vperm.xlu0 %308, %v291
        %v310 = vpop.permute.xlu0 %309
        %v316 = vcombine.high %v280, %v280
        %v317 = vcombine.high %v281, %v281
        %v318 = vcombine.high %v282, %v282
        %v319 = vcombine.high %v283, %v283
        %vm320 = vcmask 31744
        %v322 = vsel %vm320, %v284, 0
        %v325 = vsel %vm320, %v285, 0
        %v328 = vsel %vm320, %v286, 0
        %v331 = vsel %vm320, %v287, 0
        %vm333 = vcmask 1043456
        %v334 = vsel %vm333, %v280, 0
        %v336 = vsel %vm333, %v316, 0
        %v338 = vsel %vm333, %v281, 0
        %v340 = vsel %vm333, %v317, 0
        %v342 = vsel %vm333, %v282, 0
        %v344 = vsel %vm333, %v318, 0
        %v346 = vsel %vm333, %v283, 0
        %v348 = vsel %vm333, %v319, 0
        %350 = vmatprep.subr.mxu0 0.0
        %351 = vmatpush1.msra.mxu0 0.0
        %352 = vmatprep.subr.mxu0 0.0
        %353 = vmatpush1.msra.mxu0 0.0
        %354 = vmatprep.subr.mxu0 0.0
        %355 = vmatpush1.msra.mxu0 0.0
        %356 = vmatprep.subr.mxu0 0.0
        %357 = vmatpush1.msra.mxu0 0.0
        %358 = vmatprep.subr.mxu0 0.0
        %359 = vmatpush1.msra.mxu0 0.0
        %360 = vmatprep.subr.mxu0 0.0
        %361 = vmatpush1.msra.mxu0 0.0
        %362 = vmatprep.subr.mxu0 0.0
        %363 = vmatpush1.msra.mxu0 0.0
        %364 = vmatprep.subr.mxu0 0.0
        %365 = vmatpush1.msra.mxu0 0.0
        %366 = vmatprep.subr.mxu0 0.0
        %367 = vmatpush1.msra.mxu0 0.0
        %368 = vmatprep.subr.mxu0 0.0
        %369 = vmatpush1.msra.mxu0 0.0
        %370 = vmatprep.subr.mxu0 0.0
        %371 = vmatpush1.msra.mxu0 0.0
        %372 = vmatprep.subr.mxu0 0.0
        %373 = vmatpush1.msra.mxu0 0.0
        %374 = vmatprep.subr.mxu0 0.0
        %375 = vmatpush1.msra.mxu0 0.0
        %376 = vmatprep.subr.mxu0 0.0
        %377 = vmatpush1.msra.mxu0 0.0
        %378 = vmatprep.subr.mxu0 0.0
        %379 = vmatpush1.msra.mxu0 0.0
        %380 = vmatprep.subr.mxu0 %v336
        %381 = vmatpush1.msra.mxu0 %v334
        %382 = vmatprep.subr.mxu0 0.0
        %383 = vmatpush2.msra.mxu0 0.0
        %384 = vmatprep.subr.mxu0 0.0
        %385 = vmatpush2.msra.mxu0 0.0
        %386 = vmatprep.subr.mxu0 0.0
        %387 = vmatpush2.msra.mxu0 0.0
        %388 = vmatprep.subr.mxu0 0.0
        %389 = vmatpush2.msra.mxu0 0.0
        %390 = vmatprep.subr.mxu0 0.0
        %391 = vmatpush2.msra.mxu0 0.0
        %392 = vmatprep.subr.mxu0 0.0
        %393 = vmatpush2.msra.mxu0 0.0
        %394 = vmatprep.subr.mxu0 0.0
        %395 = vmatpush2.msra.mxu0 0.0
        %396 = vmatprep.subr.mxu0 0.0
        %397 = vmatpush2.msra.mxu0 0.0
        %398 = vmatprep.subr.mxu0 0.0
        %399 = vmatpush2.msra.mxu0 0.0
        %400 = vmatprep.subr.mxu0 0.0
        %401 = vmatpush2.msra.mxu0 0.0
        %402 = vmatprep.subr.mxu0 0.0
        %403 = vmatpush2.msra.mxu0 0.0
        %404 = vmatprep.subr.mxu0 0.0
        %405 = vmatpush2.msra.mxu0 0.0
        %406 = vmatprep.subr.mxu0 0.0
        %407 = vmatpush2.msra.mxu0 0.0
        %408 = vmatprep.subr.mxu0 0.0
        %409 = vmatpush2.msra.mxu0 0.0
        %410 = vmatprep.subr.mxu0 0.0
        %411 = vmatpush2.msra.mxu0 0.0
        %412 = vmatprep.subr.mxu0 0.0
        %413 = vmatpush2.msra.mxu0 0.0
        %414 = vmatprep.mubr.f32.mxu0 0.0
        %415 = vmatmul.mubr.f32.gmra.mxu0 %v322
        %v416 = vpop.f32.mrf.mxu0
        %v417 = vadd.f32 %v295, %v416
        %v418 = vpop.f32.mrf.mxu0
        %v419 = vadd.f32 %v295, %v418
        %420 = vmatprep.mubr.f32.mxu0 0.0
        %421 = vmatmul.mubr.f32.gmra.mxu0 %v325
        %v422 = vpop.f32.mrf.mxu0
        %v423 = vadd.f32 %v300, %v422
        %v424 = vpop.f32.mrf.mxu0
        %v425 = vadd.f32 %v300, %v424
        %426 = vmatprep.mubr.f32.mxu0 0.0
        %427 = vmatmul.mubr.f32.gmra.mxu0 %v328
        %v428 = vpop.f32.mrf.mxu0
        %v429 = vadd.f32 %v305, %v428
        %v430 = vpop.f32.mrf.mxu0
        %v431 = vadd.f32 %v305, %v430
        %432 = vmatprep.mubr.f32.mxu0 0.0
        %433 = vmatmul.mubr.f32.gmra.mxu0 %v331
        %v434 = vpop.f32.mrf.mxu0
        %v435 = vadd.f32 %v310, %v434
        %v436 = vpop.f32.mrf.mxu0
        %v437 = vadd.f32 %v310, %v436
        %438 = vdwg.mxu0
        %439 = vmatprep.subr.mxu0 0.0
        %440 = vmatpush1.msra.mxu0 0.0
        %441 = vmatprep.subr.mxu0 0.0
        %442 = vmatpush1.msra.mxu0 0.0
        %443 = vmatprep.subr.mxu0 0.0
        %444 = vmatpush1.msra.mxu0 0.0
        %445 = vmatprep.subr.mxu0 0.0
        %446 = vmatpush1.msra.mxu0 0.0
        %447 = vmatprep.subr.mxu0 0.0
        %448 = vmatpush1.msra.mxu0 0.0
        %449 = vmatprep.subr.mxu0 0.0
        %450 = vmatpush1.msra.mxu0 0.0
        %451 = vmatprep.subr.mxu0 0.0
        %452 = vmatpush1.msra.mxu0 0.0
        %453 = vmatprep.subr.mxu0 0.0
        %454 = vmatpush1.msra.mxu0 0.0
        %455 = vmatprep.subr.mxu0 0.0
        %456 = vmatpush1.msra.mxu0 0.0
        %457 = vmatprep.subr.mxu0 0.0
        %458 = vmatpush1.msra.mxu0 0.0
        %459 = vmatprep.subr.mxu0 0.0
        %460 = vmatpush1.msra.mxu0 0.0
        %461 = vmatprep.subr.mxu0 0.0
        %462 = vmatpush1.msra.mxu0 0.0
        %463 = vmatprep.subr.mxu0 0.0
        %464 = vmatpush1.msra.mxu0 0.0
        %465 = vmatprep.subr.mxu0 0.0
        %466 = vmatpush1.msra.mxu0 0.0
        %467 = vmatprep.subr.mxu0 0.0
        %468 = vmatpush1.msra.mxu0 0.0
        %469 = vmatprep.subr.mxu0 %v340
        %470 = vmatpush1.msra.mxu0 %v338
        %471 = vmatprep.subr.mxu0 0.0
        %472 = vmatpush2.msra.mxu0 0.0
        %473 = vmatprep.subr.mxu0 0.0
        %474 = vmatpush2.msra.mxu0 0.0
        %475 = vmatprep.subr.mxu0 0.0
        %476 = vmatpush2.msra.mxu0 0.0
        %477 = vmatprep.subr.mxu0 0.0
        %478 = vmatpush2.msra.mxu0 0.0
        %479 = vmatprep.subr.mxu0 0.0
        %480 = vmatpush2.msra.mxu0 0.0
        %481 = vmatprep.subr.mxu0 0.0
        %482 = vmatpush2.msra.mxu0 0.0
        %483 = vmatprep.subr.mxu0 0.0
        %484 = vmatpush2.msra.mxu0 0.0
        %485 = vmatprep.subr.mxu0 0.0
        %486 = vmatpush2.msra.mxu0 0.0
        %487 = vmatprep.subr.mxu0 0.0
        %488 = vmatpush2.msra.mxu0 0.0
        %489 = vmatprep.subr.mxu0 0.0
        %490 = vmatpush2.msra.mxu0 0.0
        %491 = vmatprep.subr.mxu0 0.0
        %492 = vmatpush2.msra.mxu0 0.0
        %493 = vmatprep.subr.mxu0 0.0
        %494 = vmatpush2.msra.mxu0 0.0
        %495 = vmatprep.subr.mxu0 0.0
        %496 = vmatpush2.msra.mxu0 0.0
        %497 = vmatprep.subr.mxu0 0.0
        %498 = vmatpush2.msra.mxu0 0.0
        %499 = vmatprep.subr.mxu0 0.0
        %500 = vmatpush2.msra.mxu0 0.0
        %501 = vmatprep.subr.mxu0 0.0
        %502 = vmatpush2.msra.mxu0 0.0
        %503 = vmatprep.mubr.f32.mxu0 0.0
        %504 = vmatmul.mubr.f32.gmra.mxu0 %v322
        %v505 = vpop.f32.mrf.mxu0
        %v506 = vadd.f32 %v295, %v505
        %v507 = vpop.f32.mrf.mxu0
        %v508 = vadd.f32 %v295, %v507
        %509 = vmatprep.mubr.f32.mxu0 0.0
        %510 = vmatmul.mubr.f32.gmra.mxu0 %v325
        %v511 = vpop.f32.mrf.mxu0
        %v512 = vadd.f32 %v300, %v511
        %v513 = vpop.f32.mrf.mxu0
        %v514 = vadd.f32 %v300, %v513
        %515 = vmatprep.mubr.f32.mxu0 0.0
        %516 = vmatmul.mubr.f32.gmra.mxu0 %v328
        %v517 = vpop.f32.mrf.mxu0
        %v518 = vadd.f32 %v305, %v517
        %v519 = vpop.f32.mrf.mxu0
        %v520 = vadd.f32 %v305, %v519
        %521 = vmatprep.mubr.f32.mxu0 0.0
        %522 = vmatmul.mubr.f32.gmra.mxu0 %v331
        %v523 = vpop.f32.mrf.mxu0
        %v524 = vadd.f32 %v310, %v523
        %v525 = vpop.f32.mrf.mxu0
        %v526 = vadd.f32 %v310, %v525
        %527 = vdwg.mxu0
        %528 = vmatprep.subr.mxu0 0.0
        %529 = vmatpush1.msra.mxu0 0.0
        %530 = vmatprep.subr.mxu0 0.0
        %531 = vmatpush1.msra.mxu0 0.0
        %532 = vmatprep.subr.mxu0 0.0
        %533 = vmatpush1.msra.mxu0 0.0
        %534 = vmatprep.subr.mxu0 0.0
        %535 = vmatpush1.msra.mxu0 0.0
        %536 = vmatprep.subr.mxu0 0.0
        %537 = vmatpush1.msra.mxu0 0.0
        %538 = vmatprep.subr.mxu0 0.0
        %539 = vmatpush1.msra.mxu0 0.0
        %540 = vmatprep.subr.mxu0 0.0
        %541 = vmatpush1.msra.mxu0 0.0
        %542 = vmatprep.subr.mxu0 0.0
        %543 = vmatpush1.msra.mxu0 0.0
        %544 = vmatprep.subr.mxu0 0.0
        %545 = vmatpush1.msra.mxu0 0.0
        %546 = vmatprep.subr.mxu0 0.0
        %547 = vmatpush1.msra.mxu0 0.0
        %548 = vmatprep.subr.mxu0 0.0
        %549 = vmatpush1.msra.mxu0 0.0
        %550 = vmatprep.subr.mxu0 0.0
        %551 = vmatpush1.msra.mxu0 0.0
        %552 = vmatprep.subr.mxu0 0.0
        %553 = vmatpush1.msra.mxu0 0.0
        %554 = vmatprep.subr.mxu0 0.0
        %555 = vmatpush1.msra.mxu0 0.0
        %556 = vmatprep.subr.mxu0 0.0
        %557 = vmatpush1.msra.mxu0 0.0
        %558 = vmatprep.subr.mxu0 %v344
        %559 = vmatpush1.msra.mxu0 %v342
        %560 = vmatprep.subr.mxu0 0.0
        %561 = vmatpush2.msra.mxu0 0.0
        %562 = vmatprep.subr.mxu0 0.0
        %563 = vmatpush2.msra.mxu0 0.0
        %564 = vmatprep.subr.mxu0 0.0
        %565 = vmatpush2.msra.mxu0 0.0
        %566 = vmatprep.subr.mxu0 0.0
        %567 = vmatpush2.msra.mxu0 0.0
        %568 = vmatprep.subr.mxu0 0.0
        %569 = vmatpush2.msra.mxu0 0.0
        %570 = vmatprep.subr.mxu0 0.0
        %571 = vmatpush2.msra.mxu0 0.0
        %572 = vmatprep.subr.mxu0 0.0
        %573 = vmatpush2.msra.mxu0 0.0
        %574 = vmatprep.subr.mxu0 0.0
        %575 = vmatpush2.msra.mxu0 0.0
        %576 = vmatprep.subr.mxu0 0.0
        %577 = vmatpush2.msra.mxu0 0.0
        %578 = vmatprep.subr.mxu0 0.0
        %579 = vmatpush2.msra.mxu0 0.0
        %580 = vmatprep.subr.mxu0 0.0
        %581 = vmatpush2.msra.mxu0 0.0
        %582 = vmatprep.subr.mxu0 0.0
        %583 = vmatpush2.msra.mxu0 0.0
        %584 = vmatprep.subr.mxu0 0.0
        %585 = vmatpush2.msra.mxu0 0.0
        %586 = vmatprep.subr.mxu0 0.0
        %587 = vmatpush2.msra.mxu0 0.0
        %588 = vmatprep.subr.mxu0 0.0
        %589 = vmatpush2.msra.mxu0 0.0
        %590 = vmatprep.subr.mxu0 0.0
        %591 = vmatpush2.msra.mxu0 0.0
        %592 = vmatprep.mubr.f32.mxu0 0.0
        %593 = vmatmul.mubr.f32.gmra.mxu0 %v322
        %v594 = vpop.f32.mrf.mxu0
        %v595 = vadd.f32 %v295, %v594
        %v596 = vpop.f32.mrf.mxu0
        %v597 = vadd.f32 %v295, %v596
        %598 = vmatprep.mubr.f32.mxu0 0.0
        %599 = vmatmul.mubr.f32.gmra.mxu0 %v325
        %v600 = vpop.f32.mrf.mxu0
        %v601 = vadd.f32 %v300, %v600
        %v602 = vpop.f32.mrf.mxu0
        %v603 = vadd.f32 %v300, %v602
        %604 = vmatprep.mubr.f32.mxu0 0.0
        %605 = vmatmul.mubr.f32.gmra.mxu0 %v328
        %v606 = vpop.f32.mrf.mxu0
        %v607 = vadd.f32 %v305, %v606
        %v608 = vpop.f32.mrf.mxu0
        %v609 = vadd.f32 %v305, %v608
        %610 = vmatprep.mubr.f32.mxu0 0.0
        %611 = vmatmul.mubr.f32.gmra.mxu0 %v331
        %v612 = vpop.f32.mrf.mxu0
        %v613 = vadd.f32 %v310, %v612
        %v614 = vpop.f32.mrf.mxu0
        %v615 = vadd.f32 %v310, %v614
        %616 = vdwg.mxu0
        %617 = vmatprep.subr.mxu0 0.0
        %618 = vmatpush1.msra.mxu0 0.0
        %619 = vmatprep.subr.mxu0 0.0
        %620 = vmatpush1.msra.mxu0 0.0
        %621 = vmatprep.subr.mxu0 0.0
        %622 = vmatpush1.msra.mxu0 0.0
        %623 = vmatprep.subr.mxu0 0.0
        %624 = vmatpush1.msra.mxu0 0.0
        %625 = vmatprep.subr.mxu0 0.0
        %626 = vmatpush1.msra.mxu0 0.0
        %627 = vmatprep.subr.mxu0 0.0
        %628 = vmatpush1.msra.mxu0 0.0
        %629 = vmatprep.subr.mxu0 0.0
        %630 = vmatpush1.msra.mxu0 0.0
        %631 = vmatprep.subr.mxu0 0.0
        %632 = vmatpush1.msra.mxu0 0.0
        %633 = vmatprep.subr.mxu0 0.0
        %634 = vmatpush1.msra.mxu0 0.0
        %635 = vmatprep.subr.mxu0 0.0
        %636 = vmatpush1.msra.mxu0 0.0
        %637 = vmatprep.subr.mxu0 0.0
        %638 = vmatpush1.msra.mxu0 0.0
        %639 = vmatprep.subr.mxu0 0.0
        %640 = vmatpush1.msra.mxu0 0.0
        %641 = vmatprep.subr.mxu0 0.0
        %642 = vmatpush1.msra.mxu0 0.0
        %643 = vmatprep.subr.mxu0 0.0
        %644 = vmatpush1.msra.mxu0 0.0
        %645 = vmatprep.subr.mxu0 0.0
        %646 = vmatpush1.msra.mxu0 0.0
        %647 = vmatprep.subr.mxu0 %v348
        %648 = vmatpush1.msra.mxu0 %v346
        %649 = vmatprep.subr.mxu0 0.0
        %650 = vmatpush2.msra.mxu0 0.0
        %651 = vmatprep.subr.mxu0 0.0
        %652 = vmatpush2.msra.mxu0 0.0
        %653 = vmatprep.subr.mxu0 0.0
        %654 = vmatpush2.msra.mxu0 0.0
        %655 = vmatprep.subr.mxu0 0.0
        %656 = vmatpush2.msra.mxu0 0.0
        %657 = vmatprep.subr.mxu0 0.0
        %658 = vmatpush2.msra.mxu0 0.0
        %659 = vmatprep.subr.mxu0 0.0
        %660 = vmatpush2.msra.mxu0 0.0
        %661 = vmatprep.subr.mxu0 0.0
        %662 = vmatpush2.msra.mxu0 0.0
        %663 = vmatprep.subr.mxu0 0.0
        %664 = vmatpush2.msra.mxu0 0.0
        %665 = vmatprep.subr.mxu0 0.0
        %666 = vmatpush2.msra.mxu0 0.0
        %667 = vmatprep.subr.mxu0 0.0
        %668 = vmatpush2.msra.mxu0 0.0
        %669 = vmatprep.subr.mxu0 0.0
        %670 = vmatpush2.msra.mxu0 0.0
        %671 = vmatprep.subr.mxu0 0.0
        %672 = vmatpush2.msra.mxu0 0.0
        %673 = vmatprep.subr.mxu0 0.0
        %674 = vmatpush2.msra.mxu0 0.0
        %675 = vmatprep.subr.mxu0 0.0
        %676 = vmatpush2.msra.mxu0 0.0
        %677 = vmatprep.subr.mxu0 0.0
        %678 = vmatpush2.msra.mxu0 0.0
        %679 = vmatprep.subr.mxu0 0.0
        %680 = vmatpush2.msra.mxu0 0.0
        %681 = vmatprep.mubr.f32.mxu0 0.0
        %682 = vmatmul.mubr.f32.gmra.mxu0 %v322
        %v683 = vpop.f32.mrf.mxu0
        %v684 = vadd.f32 %v295, %v683
        %v685 = vpop.f32.mrf.mxu0
        %v686 = vadd.f32 %v295, %v685
        %687 = vmatprep.mubr.f32.mxu0 0.0
        %688 = vmatmul.mubr.f32.gmra.mxu0 %v325
        %v689 = vpop.f32.mrf.mxu0
        %v690 = vadd.f32 %v300, %v689
        %v691 = vpop.f32.mrf.mxu0
        %v692 = vadd.f32 %v300, %v691
        %693 = vmatprep.mubr.f32.mxu0 0.0
        %694 = vmatmul.mubr.f32.gmra.mxu0 %v328
        %v695 = vpop.f32.mrf.mxu0
        %v696 = vadd.f32 %v305, %v695
        %v697 = vpop.f32.mrf.mxu0
        %v698 = vadd.f32 %v305, %v697
        %699 = vmatprep.mubr.f32.mxu0 0.0
        %700 = vmatmul.mubr.f32.gmra.mxu0 %v331
        %v701 = vpop.f32.mrf.mxu0
        %v702 = vadd.f32 %v310, %v701
        %v703 = vpop.f32.mrf.mxu0
        %v704 = vadd.f32 %v310, %v703
        %705 = vdwg.mxu0
        %v706 = vmax.f32 %v417, 0.0
        %v707 = vmax.f32 %v419, 0.0
        %v708 = vmax.f32 %v506, 0.0
        %v709 = vmax.f32 %v508, 0.0
        %v710 = vmax.f32 %v595, 0.0
        %v711 = vmax.f32 %v597, 0.0
        %v712 = vmax.f32 %v684, 0.0
        %v713 = vmax.f32 %v686, 0.0
        %v714 = vmax.f32 %v423, 0.0
        %v715 = vmax.f32 %v425, 0.0
        %v716 = vmax.f32 %v512, 0.0
        %v717 = vmax.f32 %v514, 0.0
        %v718 = vmax.f32 %v601, 0.0
        %v719 = vmax.f32 %v603, 0.0
        %v720 = vmax.f32 %v690, 0.0
        %v721 = vmax.f32 %v692, 0.0
        %v722 = vmax.f32 %v429, 0.0
        %v723 = vmax.f32 %v431, 0.0
        %v724 = vmax.f32 %v518, 0.0
        %v725 = vmax.f32 %v520, 0.0
        %v726 = vmax.f32 %v607, 0.0
        %v727 = vmax.f32 %v609, 0.0
        %v728 = vmax.f32 %v696, 0.0
        %v729 = vmax.f32 %v698, 0.0
        %v730 = vmax.f32 %v435, 0.0
        %v731 = vmax.f32 %v437, 0.0
        %v732 = vmax.f32 %v524, 0.0
        %v733 = vmax.f32 %v526, 0.0
        %v734 = vmax.f32 %v613, 0.0
        %v735 = vmax.f32 %v615, 0.0
        %v736 = vmax.f32 %v702, 0.0
        %v737 = vmax.f32 %v704, 0.0
        %v738 = vld [vmem:[%s3] sm:$0xff]
        %v739 = vld [vmem:[%s3 + $0x8] sm:$0xff]
        %v740 = vld [vmem:[%s3 + $0x10] sm:$0xff]
        %v741 = vld [vmem:[%s3 + $0x18] sm:$0xff]
        %v742 = vld [vmem:[%s4] sm:$0xff]
        %v743 = vld [vmem:[%s4 + $0x8] sm:$0xff]
        %v744 = vld [vmem:[%s4 + $0x10] sm:$0xff]
        %v745 = vld [vmem:[%s4 + $0x18] sm:$0xff]
        %747 = vset.pattern.permute.xlu0 0
        %748 = vperm.xlu0 %747, %v742
        %v749 = vpop.permute.xlu0 %748
        %752 = vset.pattern.permute.xlu0 0
        %753 = vperm.xlu0 %752, %v743
        %v754 = vpop.permute.xlu0 %753
        %757 = vset.pattern.permute.xlu0 0
        %758 = vperm.xlu0 %757, %v744
        %v759 = vpop.permute.xlu0 %758
        %762 = vset.pattern.permute.xlu0 0
        %763 = vperm.xlu0 %762, %v745
        %v764 = vpop.permute.xlu0 %763
        %vm766 = vcmask 261120
        %v768 = vsel %vm766, %v738, 0
        %v771 = vsel %vm766, %v739, 0
        %v774 = vsel %vm766, %v740, 0
        %v777 = vsel %vm766, %v741, 0
        %779 = vmatprep.subr.mxu0 0.0
        %780 = vmatpush1.msra.mxu0 0.0
        %781 = vmatprep.subr.mxu0 0.0
        %782 = vmatpush1.msra.mxu0 0.0
        %783 = vmatprep.subr.mxu0 0.0
        %784 = vmatpush1.msra.mxu0 0.0
        %785 = vmatprep.subr.mxu0 0.0
        %786 = vmatpush1.msra.mxu0 0.0
        %787 = vmatprep.subr.mxu0 0.0
        %788 = vmatpush1.msra.mxu0 0.0
        %789 = vmatprep.subr.mxu0 0.0
        %790 = vmatpush1.msra.mxu0 0.0
        %791 = vmatprep.subr.mxu0 0.0
        %792 = vmatpush1.msra.mxu0 0.0
        %793 = vmatprep.subr.mxu0 0.0
        %794 = vmatpush1.msra.mxu0 0.0
        %795 = vmatprep.subr.mxu0 0.0
        %796 = vmatpush1.msra.mxu0 0.0
        %797 = vmatprep.subr.mxu0 0.0
        %798 = vmatpush1.msra.mxu0 0.0
        %799 = vmatprep.subr.mxu0 0.0
        %800 = vmatpush1.msra.mxu0 0.0
        %801 = vmatprep.subr.mxu0 0.0
        %802 = vmatpush1.msra.mxu0 0.0
        %803 = vmatprep.subr.mxu0 %v731
        %804 = vmatpush1.msra.mxu0 %v730
        %805 = vmatprep.subr.mxu0 %v723
        %806 = vmatpush1.msra.mxu0 %v722
        %807 = vmatprep.subr.mxu0 %v715
        %808 = vmatpush1.msra.mxu0 %v714
        %809 = vmatprep.subr.mxu0 %v707
        %810 = vmatpush1.msra.mxu0 %v706
        %811 = vmatprep.subr.mxu0 0.0
        %812 = vmatpush2.msra.mxu0 0.0
        %813 = vmatprep.subr.mxu0 0.0
        %814 = vmatpush2.msra.mxu0 0.0
        %815 = vmatprep.subr.mxu0 0.0
        %816 = vmatpush2.msra.mxu0 0.0
        %817 = vmatprep.subr.mxu0 0.0
        %818 = vmatpush2.msra.mxu0 0.0
        %819 = vmatprep.subr.mxu0 0.0
        %820 = vmatpush2.msra.mxu0 0.0
        %821 = vmatprep.subr.mxu0 0.0
        %822 = vmatpush2.msra.mxu0 0.0
        %823 = vmatprep.subr.mxu0 0.0
        %824 = vmatpush2.msra.mxu0 0.0
        %825 = vmatprep.subr.mxu0 0.0
        %826 = vmatpush2.msra.mxu0 0.0
        %827 = vmatprep.subr.mxu0 0.0
        %828 = vmatpush2.msra.mxu0 0.0
        %829 = vmatprep.subr.mxu0 0.0
        %830 = vmatpush2.msra.mxu0 0.0
        %831 = vmatprep.subr.mxu0 0.0
        %832 = vmatpush2.msra.mxu0 0.0
        %833 = vmatprep.subr.mxu0 0.0
        %834 = vmatpush2.msra.mxu0 0.0
        %835 = vmatprep.subr.mxu0 0.0
        %836 = vmatpush2.msra.mxu0 0.0
        %837 = vmatprep.subr.mxu0 0.0
        %838 = vmatpush2.msra.mxu0 0.0
        %839 = vmatprep.subr.mxu0 0.0
        %840 = vmatpush2.msra.mxu0 0.0
        %841 = vmatprep.subr.mxu0 0.0
        %842 = vmatpush2.msra.mxu0 0.0
        %843 = vmatprep.mubr.f32.mxu0 0.0
        %844 = vmatmul.mubr.f32.gmra.mxu0 %v768
        %v845 = vpop.f32.mrf.mxu0
        %v846 = vadd.f32 %v749, %v845
        %v847 = vpop.f32.mrf.mxu0
        %v848 = vadd.f32 %v749, %v847
        %849 = vmatprep.mubr.f32.mxu0 0.0
        %850 = vmatmul.mubr.f32.gmra.mxu0 %v771
        %v851 = vpop.f32.mrf.mxu0
        %v852 = vadd.f32 %v754, %v851
        %v853 = vpop.f32.mrf.mxu0
        %v854 = vadd.f32 %v754, %v853
        %855 = vmatprep.mubr.f32.mxu0 0.0
        %856 = vmatmul.mubr.f32.gmra.mxu0 %v774
        %v857 = vpop.f32.mrf.mxu0
        %v858 = vadd.f32 %v759, %v857
        %v859 = vpop.f32.mrf.mxu0
        %v860 = vadd.f32 %v759, %v859
        %861 = vmatprep.mubr.f32.mxu0 0.0
        %862 = vmatmul.mubr.f32.gmra.mxu0 %v777
        %v863 = vpop.f32.mrf.mxu0
        %v864 = vadd.f32 %v764, %v863
        %v865 = vpop.f32.mrf.mxu0
        %v866 = vadd.f32 %v764, %v865
        %867 = vdwg.mxu0
        %868 = vmatprep.subr.mxu0 0.0
        %869 = vmatpush1.msra.mxu0 0.0
        %870 = vmatprep.subr.mxu0 0.0
        %871 = vmatpush1.msra.mxu0 0.0
        %872 = vmatprep.subr.mxu0 0.0
        %873 = vmatpush1.msra.mxu0 0.0
        %874 = vmatprep.subr.mxu0 0.0
        %875 = vmatpush1.msra.mxu0 0.0
        %876 = vmatprep.subr.mxu0 0.0
        %877 = vmatpush1.msra.mxu0 0.0
        %878 = vmatprep.subr.mxu0 0.0
        %879 = vmatpush1.msra.mxu0 0.0
        %880 = vmatprep.subr.mxu0 0.0
        %881 = vmatpush1.msra.mxu0 0.0
        %882 = vmatprep.subr.mxu0 0.0
        %883 = vmatpush1.msra.mxu0 0.0
        %884 = vmatprep.subr.mxu0 0.0
        %885 = vmatpush1.msra.mxu0 0.0
        %886 = vmatprep.subr.mxu0 0.0
        %887 = vmatpush1.msra.mxu0 0.0
        %888 = vmatprep.subr.mxu0 0.0
        %889 = vmatpush1.msra.mxu0 0.0
        %890 = vmatprep.subr.mxu0 0.0
        %891 = vmatpush1.msra.mxu0 0.0
        %892 = vmatprep.subr.mxu0 %v733
        %893 = vmatpush1.msra.mxu0 %v732
        %894 = vmatprep.subr.mxu0 %v725
        %895 = vmatpush1.msra.mxu0 %v724
        %896 = vmatprep.subr.mxu0 %v717
        %897 = vmatpush1.msra.mxu0 %v716
        %898 = vmatprep.subr.mxu0 %v709
        %899 = vmatpush1.msra.mxu0 %v708
        %900 = vmatprep.subr.mxu0 0.0
        %901 = vmatpush2.msra.mxu0 0.0
        %902 = vmatprep.subr.mxu0 0.0
        %903 = vmatpush2.msra.mxu0 0.0
        %904 = vmatprep.subr.mxu0 0.0
        %905 = vmatpush2.msra.mxu0 0.0
        %906 = vmatprep.subr.mxu0 0.0
        %907 = vmatpush2.msra.mxu0 0.0
        %908 = vmatprep.subr.mxu0 0.0
        %909 = vmatpush2.msra.mxu0 0.0
        %910 = vmatprep.subr.mxu0 0.0
        %911 = vmatpush2.msra.mxu0 0.0
        %912 = vmatprep.subr.mxu0 0.0
        %913 = vmatpush2.msra.mxu0 0.0
        %914 = vmatprep.subr.mxu0 0.0
        %915 = vmatpush2.msra.mxu0 0.0
        %916 = vmatprep.subr.mxu0 0.0
        %917 = vmatpush2.msra.mxu0 0.0
        %918 = vmatprep.subr.mxu0 0.0
        %919 = vmatpush2.msra.mxu0 0.0
        %920 = vmatprep.subr.mxu0 0.0
        %921 = vmatpush2.msra.mxu0 0.0
        %922 = vmatprep.subr.mxu0 0.0
        %923 = vmatpush2.msra.mxu0 0.0
        %924 = vmatprep.subr.mxu0 0.0
        %925 = vmatpush2.msra.mxu0 0.0
        %926 = vmatprep.subr.mxu0 0.0
        %927 = vmatpush2.msra.mxu0 0.0
        %928 = vmatprep.subr.mxu0 0.0
        %929 = vmatpush2.msra.mxu0 0.0
        %930 = vmatprep.subr.mxu0 0.0
        %931 = vmatpush2.msra.mxu0 0.0
        %932 = vmatprep.mubr.f32.mxu0 0.0
        %933 = vmatmul.mubr.f32.gmra.mxu0 %v768
        %v934 = vpop.f32.mrf.mxu0
        %v935 = vadd.f32 %v749, %v934
        %v936 = vpop.f32.mrf.mxu0
        %v937 = vadd.f32 %v749, %v936
        %938 = vmatprep.mubr.f32.mxu0 0.0
        %939 = vmatmul.mubr.f32.gmra.mxu0 %v771
        %v940 = vpop.f32.mrf.mxu0
        %v941 = vadd.f32 %v754, %v940
        %v942 = vpop.f32.mrf.mxu0
        %v943 = vadd.f32 %v754, %v942
        %944 = vmatprep.mubr.f32.mxu0 0.0
        %945 = vmatmul.mubr.f32.gmra.mxu0 %v774
        %v946 = vpop.f32.mrf.mxu0
        %v947 = vadd.f32 %v759, %v946
        %v948 = vpop.f32.mrf.mxu0
        %v949 = vadd.f32 %v759, %v948
        %950 = vmatprep.mubr.f32.mxu0 0.0
        %951 = vmatmul.mubr.f32.gmra.mxu0 %v777
        %v952 = vpop.f32.mrf.mxu0
        %v953 = vadd.f32 %v764, %v952
        %v954 = vpop.f32.mrf.mxu0
        %v955 = vadd.f32 %v764, %v954
        %956 = vdwg.mxu0
        %957 = vmatprep.subr.mxu0 0.0
        %958 = vmatpush1.msra.mxu0 0.0
        %959 = vmatprep.subr.mxu0 0.0
        %960 = vmatpush1.msra.mxu0 0.0
        %961 = vmatprep.subr.mxu0 0.0
        %962 = vmatpush1.msra.mxu0 0.0
        %963 = vmatprep.subr.mxu0 0.0
        %964 = vmatpush1.msra.mxu0 0.0
        %965 = vmatprep.subr.mxu0 0.0
        %966 = vmatpush1.msra.mxu0 0.0
        %967 = vmatprep.subr.mxu0 0.0
        %968 = vmatpush1.msra.mxu0 0.0
        %969 = vmatprep.subr.mxu0 0.0
        %970 = vmatpush1.msra.mxu0 0.0
        %971 = vmatprep.subr.mxu0 0.0
        %972 = vmatpush1.msra.mxu0 0.0
        %973 = vmatprep.subr.mxu0 0.0
        %974 = vmatpush1.msra.mxu0 0.0
        %975 = vmatprep.subr.mxu0 0.0
        %976 = vmatpush1.msra.mxu0 0.0
        %977 = vmatprep.subr.mxu0 0.0
        %978 = vmatpush1.msra.mxu0 0.0
        %979 = vmatprep.subr.mxu0 0.0
        %980 = vmatpush1.msra.mxu0 0.0
        %981 = vmatprep.subr.mxu0 %v735
        %982 = vmatpush1.msra.mxu0 %v734
        %983 = vmatprep.subr.mxu0 %v727
        %984 = vmatpush1.msra.mxu0 %v726
        %985 = vmatprep.subr.mxu0 %v719
        %986 = vmatpush1.msra.mxu0 %v718
        %987 = vmatprep.subr.mxu0 %v711
        %988 = vmatpush1.msra.mxu0 %v710
        %989 = vmatprep.subr.mxu0 0.0
        %990 = vmatpush2.msra.mxu0 0.0
        %991 = vmatprep.subr.mxu0 0.0
        %992 = vmatpush2.msra.mxu0 0.0
        %993 = vmatprep.subr.mxu0 0.0
        %994 = vmatpush2.msra.mxu0 0.0
        %995 = vmatprep.subr.mxu0 0.0
        %996 = vmatpush2.msra.mxu0 0.0
        %997 = vmatprep.subr.mxu0 0.0
        %998 = vmatpush2.msra.mxu0 0.0
        %999 = vmatprep.subr.mxu0 0.0
        %1000 = vmatpush2.msra.mxu0 0.0
        %1001 = vmatprep.subr.mxu0 0.0
        %1002 = vmatpush2.msra.mxu0 0.0
        %1003 = vmatprep.subr.mxu0 0.0
        %1004 = vmatpush2.msra.mxu0 0.0
        %1005 = vmatprep.subr.mxu0 0.0
        %1006 = vmatpush2.msra.mxu0 0.0
        %1007 = vmatprep.subr.mxu0 0.0
        %1008 = vmatpush2.msra.mxu0 0.0
        %1009 = vmatprep.subr.mxu0 0.0
        %1010 = vmatpush2.msra.mxu0 0.0
        %1011 = vmatprep.subr.mxu0 0.0
        %1012 = vmatpush2.msra.mxu0 0.0
        %1013 = vmatprep.subr.mxu0 0.0
        %1014 = vmatpush2.msra.mxu0 0.0
        %1015 = vmatprep.subr.mxu0 0.0
        %1016 = vmatpush2.msra.mxu0 0.0
        %1017 = vmatprep.subr.mxu0 0.0
        %1018 = vmatpush2.msra.mxu0 0.0
        %1019 = vmatprep.subr.mxu0 0.0
        %1020 = vmatpush2.msra.mxu0 0.0
        %1021 = vmatprep.mubr.f32.mxu0 0.0
        %1022 = vmatmul.mubr.f32.gmra.mxu0 %v768
        %v1023 = vpop.f32.mrf.mxu0
        %v1024 = vadd.f32 %v749, %v1023
        %v1025 = vpop.f32.mrf.mxu0
        %v1026 = vadd.f32 %v749, %v1025
        %1027 = vmatprep.mubr.f32.mxu0 0.0
        %1028 = vmatmul.mubr.f32.gmra.mxu0 %v771
        %v1029 = vpop.f32.mrf.mxu0
        %v1030 = vadd.f32 %v754, %v1029
        %v1031 = vpop.f32.mrf.mxu0
        %v1032 = vadd.f32 %v754, %v1031
        %1033 = vmatprep.mubr.f32.mxu0 0.0
        %1034 = vmatmul.mubr.f32.gmra.mxu0 %v774
        %v1035 = vpop.f32.mrf.mxu0
        %v1036 = vadd.f32 %v759, %v1035
        %v1037 = vpop.f32.mrf.mxu0
        %v1038 = vadd.f32 %v759, %v1037
        %1039 = vmatprep.mubr.f32.mxu0 0.0
        %1040 = vmatmul.mubr.f32.gmra.mxu0 %v777
        %v1041 = vpop.f32.mrf.mxu0
        %v1042 = vadd.f32 %v764, %v1041
        %v1043 = vpop.f32.mrf.mxu0
        %v1044 = vadd.f32 %v764, %v1043
        %1045 = vdwg.mxu0
        %1046 = vmatprep.subr.mxu0 0.0
        %1047 = vmatpush1.msra.mxu0 0.0
        %1048 = vmatprep.subr.mxu0 0.0
        %1049 = vmatpush1.msra.mxu0 0.0
        %1050 = vmatprep.subr.mxu0 0.0
        %1051 = vmatpush1.msra.mxu0 0.0
        %1052 = vmatprep.subr.mxu0 0.0
        %1053 = vmatpush1.msra.mxu0 0.0
        %1054 = vmatprep.subr.mxu0 0.0
        %1055 = vmatpush1.msra.mxu0 0.0
        %1056 = vmatprep.subr.mxu0 0.0
        %1057 = vmatpush1.msra.mxu0 0.0
        %1058 = vmatprep.subr.mxu0 0.0
        %1059 = vmatpush1.msra.mxu0 0.0
        %1060 = vmatprep.subr.mxu0 0.0
        %1061 = vmatpush1.msra.mxu0 0.0
        %1062 = vmatprep.subr.mxu0 0.0
        %1063 = vmatpush1.msra.mxu0 0.0
        %1064 = vmatprep.subr.mxu0 0.0
        %1065 = vmatpush1.msra.mxu0 0.0
        %1066 = vmatprep.subr.mxu0 0.0
        %1067 = vmatpush1.msra.mxu0 0.0
        %1068 = vmatprep.subr.mxu0 0.0
        %1069 = vmatpush1.msra.mxu0 0.0
        %1070 = vmatprep.subr.mxu0 %v737
        %1071 = vmatpush1.msra.mxu0 %v736
        %1072 = vmatprep.subr.mxu0 %v729
        %1073 = vmatpush1.msra.mxu0 %v728
        %1074 = vmatprep.subr.mxu0 %v721
        %1075 = vmatpush1.msra.mxu0 %v720
        %1076 = vmatprep.subr.mxu0 %v713
        %1077 = vmatpush1.msra.mxu0 %v712
        %1078 = vmatprep.subr.mxu0 0.0
        %1079 = vmatpush2.msra.mxu0 0.0
        %1080 = vmatprep.subr.mxu0 0.0
        %1081 = vmatpush2.msra.mxu0 0.0
        %1082 = vmatprep.subr.mxu0 0.0
        %1083 = vmatpush2.msra.mxu0 0.0
        %1084 = vmatprep.subr.mxu0 0.0
        %1085 = vmatpush2.msra.mxu0 0.0
        %1086 = vmatprep.subr.mxu0 0.0
        %1087 = vmatpush2.msra.mxu0 0.0
        %1088 = vmatprep.subr.mxu0 0.0
        %1089 = vmatpush2.msra.mxu0 0.0
        %1090 = vmatprep.subr.mxu0 0.0
        %1091 = vmatpush2.msra.mxu0 0.0
        %1092 = vmatprep.subr.mxu0 0.0
        %1093 = vmatpush2.msra.mxu0 0.0
        %1094 = vmatprep.subr.mxu0 0.0
        %1095 = vmatpush2.msra.mxu0 0.0
        %1096 = vmatprep.subr.mxu0 0.0
        %1097 = vmatpush2.msra.mxu0 0.0
        %1098 = vmatprep.subr.mxu0 0.0
        %1099 = vmatpush2.msra.mxu0 0.0
        %1100 = vmatprep.subr.mxu0 0.0
        %1101 = vmatpush2.msra.mxu0 0.0
        %1102 = vmatprep.subr.mxu0 0.0
        %1103 = vmatpush2.msra.mxu0 0.0
        %1104 = vmatprep.subr.mxu0 0.0
        %1105 = vmatpush2.msra.mxu0 0.0
        %1106 = vmatprep.subr.mxu0 0.0
        %1107 = vmatpush2.msra.mxu0 0.0
        %1108 = vmatprep.subr.mxu0 0.0
        %1109 = vmatpush2.msra.mxu0 0.0
        %1110 = vmatprep.mubr.f32.mxu0 0.0
        %1111 = vmatmul.mubr.f32.gmra.mxu0 %v768
        %v1112 = vpop.f32.mrf.mxu0
        %v1113 = vadd.f32 %v749, %v1112
        %v1114 = vpop.f32.mrf.mxu0
        %v1115 = vadd.f32 %v749, %v1114
        %1116 = vmatprep.mubr.f32.mxu0 0.0
        %1117 = vmatmul.mubr.f32.gmra.mxu0 %v771
        %v1118 = vpop.f32.mrf.mxu0
        %v1119 = vadd.f32 %v754, %v1118
        %v1120 = vpop.f32.mrf.mxu0
        %v1121 = vadd.f32 %v754, %v1120
        %1122 = vmatprep.mubr.f32.mxu0 0.0
        %1123 = vmatmul.mubr.f32.gmra.mxu0 %v774
        %v1124 = vpop.f32.mrf.mxu0
        %v1125 = vadd.f32 %v759, %v1124
        %v1126 = vpop.f32.mrf.mxu0
        %v1127 = vadd.f32 %v759, %v1126
        %1128 = vmatprep.mubr.f32.mxu0 0.0
        %1129 = vmatmul.mubr.f32.gmra.mxu0 %v777
        %v1130 = vpop.f32.mrf.mxu0
        %v1131 = vadd.f32 %v764, %v1130
        %v1132 = vpop.f32.mrf.mxu0
        %v1133 = vadd.f32 %v764, %v1132
        %1134 = vdwg.mxu0
        %v1135 = vmax.f32 %v846, 0.0
        %v1136 = vmax.f32 %v848, 0.0
        %v1137 = vmax.f32 %v935, 0.0
        %v1138 = vmax.f32 %v937, 0.0
        %v1139 = vmax.f32 %v1024, 0.0
        %v1140 = vmax.f32 %v1026, 0.0
        %v1141 = vmax.f32 %v1113, 0.0
        %v1142 = vmax.f32 %v1115, 0.0
        %v1143 = vmax.f32 %v852, 0.0
        %v1144 = vmax.f32 %v854, 0.0
        %v1145 = vmax.f32 %v941, 0.0
        %v1146 = vmax.f32 %v943, 0.0
        %v1147 = vmax.f32 %v1030, 0.0
        %v1148 = vmax.f32 %v1032, 0.0
        %v1149 = vmax.f32 %v1119, 0.0
        %v1150 = vmax.f32 %v1121, 0.0
        %v1151 = vmax.f32 %v858, 0.0
        %v1152 = vmax.f32 %v860, 0.0
        %v1153 = vmax.f32 %v947, 0.0
        %v1154 = vmax.f32 %v949, 0.0
        %v1155 = vmax.f32 %v1036, 0.0
        %v1156 = vmax.f32 %v1038, 0.0
        %v1157 = vmax.f32 %v1125, 0.0
        %v1158 = vmax.f32 %v1127, 0.0
        %v1159 = vmax.f32 %v864, 0.0
        %v1160 = vmax.f32 %v866, 0.0
        %v1161 = vmax.f32 %v953, 0.0
        %v1162 = vmax.f32 %v955, 0.0
        %v1163 = vmax.f32 %v1042, 0.0
        %v1164 = vmax.f32 %v1044, 0.0
        %v1165 = vmax.f32 %v1131, 0.0
        %v1166 = vmax.f32 %v1133, 0.0
        %v1167 = vld [vmem:[%s5] sm:$0x7]
        %v1168 = vld [vmem:[%s6] sm:$0x7]
        %1170 = vset.pattern.permute.xlu0 0
        %1171 = vperm.xlu0 %1170, %v1168
        %v1172 = vpop.permute.xlu0 %1171
        %v1175 = vsel %vm766, %v1167, 0
        %1177 = vmatprep.subr.mxu0 0.0
        %1178 = vmatpush1.msra.mxu0 0.0
        %1179 = vmatprep.subr.mxu0 0.0
        %1180 = vmatpush1.msra.mxu0 0.0
        %1181 = vmatprep.subr.mxu0 0.0
        %1182 = vmatpush1.msra.mxu0 0.0
        %1183 = vmatprep.subr.mxu0 0.0
        %1184 = vmatpush1.msra.mxu0 0.0
        %1185 = vmatprep.subr.mxu0 0.0
        %1186 = vmatpush1.msra.mxu0 0.0
        %1187 = vmatprep.subr.mxu0 0.0
        %1188 = vmatpush1.msra.mxu0 0.0
        %1189 = vmatprep.subr.mxu0 0.0
        %1190 = vmatpush1.msra.mxu0 0.0
        %1191 = vmatprep.subr.mxu0 0.0
        %1192 = vmatpush1.msra.mxu0 0.0
        %1193 = vmatprep.subr.mxu0 0.0
        %1194 = vmatpush1.msra.mxu0 0.0
        %1195 = vmatprep.subr.mxu0 0.0
        %1196 = vmatpush1.msra.mxu0 0.0
        %1197 = vmatprep.subr.mxu0 0.0
        %1198 = vmatpush1.msra.mxu0 0.0
        %1199 = vmatprep.subr.mxu0 0.0
        %1200 = vmatpush1.msra.mxu0 0.0
        %1201 = vmatprep.subr.mxu0 %v1160
        %1202 = vmatpush1.msra.mxu0 %v1159
        %1203 = vmatprep.subr.mxu0 %v1152
        %1204 = vmatpush1.msra.mxu0 %v1151
        %1205 = vmatprep.subr.mxu0 %v1144
        %1206 = vmatpush1.msra.mxu0 %v1143
        %1207 = vmatprep.subr.mxu0 %v1136
        %1208 = vmatpush1.msra.mxu0 %v1135
        %1209 = vmatprep.subr.mxu0 0.0
        %1210 = vmatpush2.msra.mxu0 0.0
        %1211 = vmatprep.subr.mxu0 0.0
        %1212 = vmatpush2.msra.mxu0 0.0
        %1213 = vmatprep.subr.mxu0 0.0
        %1214 = vmatpush2.msra.mxu0 0.0
        %1215 = vmatprep.subr.mxu0 0.0
        %1216 = vmatpush2.msra.mxu0 0.0
        %1217 = vmatprep.subr.mxu0 0.0
        %1218 = vmatpush2.msra.mxu0 0.0
        %1219 = vmatprep.subr.mxu0 0.0
        %1220 = vmatpush2.msra.mxu0 0.0
        %1221 = vmatprep.subr.mxu0 0.0
        %1222 = vmatpush2.msra.mxu0 0.0
        %1223 = vmatprep.subr.mxu0 0.0
        %1224 = vmatpush2.msra.mxu0 0.0
        %1225 = vmatprep.subr.mxu0 0.0
        %1226 = vmatpush2.msra.mxu0 0.0
        %1227 = vmatprep.subr.mxu0 0.0
        %1228 = vmatpush2.msra.mxu0 0.0
        %1229 = vmatprep.subr.mxu0 0.0
        %1230 = vmatpush2.msra.mxu0 0.0
        %1231 = vmatprep.subr.mxu0 0.0
        %1232 = vmatpush2.msra.mxu0 0.0
        %1233 = vmatprep.subr.mxu0 0.0
        %1234 = vmatpush2.msra.mxu0 0.0
        %1235 = vmatprep.subr.mxu0 0.0
        %1236 = vmatpush2.msra.mxu0 0.0
        %1237 = vmatprep.subr.mxu0 0.0
        %1238 = vmatpush2.msra.mxu0 0.0
        %1239 = vmatprep.subr.mxu0 0.0
        %1240 = vmatpush2.msra.mxu0 0.0
        %1241 = vmatprep.mubr.f32.mxu0 0.0
        %1242 = vmatmul.mubr.f32.gmra.mxu0 %v1175
        %v1243 = vpop.f32.mrf.mxu0
        %v1244 = vadd.f32 %v1172, %v1243
        %v1245 = vpop.f32.mrf.mxu0
        %v1246 = vadd.f32 %v1172, %v1245
        %1247 = vdwg.mxu0
        %1248 = vmatprep.subr.mxu0 0.0
        %1249 = vmatpush1.msra.mxu0 0.0
        %1250 = vmatprep.subr.mxu0 0.0
        %1251 = vmatpush1.msra.mxu0 0.0
        %1252 = vmatprep.subr.mxu0 0.0
        %1253 = vmatpush1.msra.mxu0 0.0
        %1254 = vmatprep.subr.mxu0 0.0
        %1255 = vmatpush1.msra.mxu0 0.0
        %1256 = vmatprep.subr.mxu0 0.0
        %1257 = vmatpush1.msra.mxu0 0.0
        %1258 = vmatprep.subr.mxu0 0.0
        %1259 = vmatpush1.msra.mxu0 0.0
        %1260 = vmatprep.subr.mxu0 0.0
        %1261 = vmatpush1.msra.mxu0 0.0
        %1262 = vmatprep.subr.mxu0 0.0
        %1263 = vmatpush1.msra.mxu0 0.0
        %1264 = vmatprep.subr.mxu0 0.0
        %1265 = vmatpush1.msra.mxu0 0.0
        %1266 = vmatprep.subr.mxu0 0.0
        %1267 = vmatpush1.msra.mxu0 0.0
        %1268 = vmatprep.subr.mxu0 0.0
        %1269 = vmatpush1.msra.mxu0 0.0
        %1270 = vmatprep.subr.mxu0 0.0
        %1271 = vmatpush1.msra.mxu0 0.0
        %1272 = vmatprep.subr.mxu0 %v1162
        %1273 = vmatpush1.msra.mxu0 %v1161
        %1274 = vmatprep.subr.mxu0 %v1154
        %1275 = vmatpush1.msra.mxu0 %v1153
        %1276 = vmatprep.subr.mxu0 %v1146
        %1277 = vmatpush1.msra.mxu0 %v1145
        %1278 = vmatprep.subr.mxu0 %v1138
        %1279 = vmatpush1.msra.mxu0 %v1137
        %1280 = vmatprep.subr.mxu0 0.0
        %1281 = vmatpush2.msra.mxu0 0.0
        %1282 = vmatprep.subr.mxu0 0.0
        %1283 = vmatpush2.msra.mxu0 0.0
        %1284 = vmatprep.subr.mxu0 0.0
        %1285 = vmatpush2.msra.mxu0 0.0
        %1286 = vmatprep.subr.mxu0 0.0
        %1287 = vmatpush2.msra.mxu0 0.0
        %1288 = vmatprep.subr.mxu0 0.0
        %1289 = vmatpush2.msra.mxu0 0.0
        %1290 = vmatprep.subr.mxu0 0.0
        %1291 = vmatpush2.msra.mxu0 0.0
        %1292 = vmatprep.subr.mxu0 0.0
        %1293 = vmatpush2.msra.mxu0 0.0
        %1294 = vmatprep.subr.mxu0 0.0
        %1295 = vmatpush2.msra.mxu0 0.0
        %1296 = vmatprep.subr.mxu0 0.0
        %1297 = vmatpush2.msra.mxu0 0.0
        %1298 = vmatprep.subr.mxu0 0.0
        %1299 = vmatpush2.msra.mxu0 0.0
        %1300 = vmatprep.subr.mxu0 0.0
        %1301 = vmatpush2.msra.mxu0 0.0
        %1302 = vmatprep.subr.mxu0 0.0
        %1303 = vmatpush2.msra.mxu0 0.0
        %1304 = vmatprep.subr.mxu0 0.0
        %1305 = vmatpush2.msra.mxu0 0.0
        %1306 = vmatprep.subr.mxu0 0.0
        %1307 = vmatpush2.msra.mxu0 0.0
        %1308 = vmatprep.subr.mxu0 0.0
        %1309 = vmatpush2.msra.mxu0 0.0
        %1310 = vmatprep.subr.mxu0 0.0
        %1311 = vmatpush2.msra.mxu0 0.0
        %1312 = vmatprep.mubr.f32.mxu0 0.0
        %1313 = vmatmul.mubr.f32.gmra.mxu0 %v1175
        %v1314 = vpop.f32.mrf.mxu0
        %v1315 = vadd.f32 %v1172, %v1314
        %v1316 = vpop.f32.mrf.mxu0
        %v1317 = vadd.f32 %v1172, %v1316
        %1318 = vdwg.mxu0
        %1319 = vmatprep.subr.mxu0 0.0
        %1320 = vmatpush1.msra.mxu0 0.0
        %1321 = vmatprep.subr.mxu0 0.0
        %1322 = vmatpush1.msra.mxu0 0.0
        %1323 = vmatprep.subr.mxu0 0.0
        %1324 = vmatpush1.msra.mxu0 0.0
        %1325 = vmatprep.subr.mxu0 0.0
        %1326 = vmatpush1.msra.mxu0 0.0
        %1327 = vmatprep.subr.mxu0 0.0
        %1328 = vmatpush1.msra.mxu0 0.0
        %1329 = vmatprep.subr.mxu0 0.0
        %1330 = vmatpush1.msra.mxu0 0.0
        %1331 = vmatprep.subr.mxu0 0.0
        %1332 = vmatpush1.msra.mxu0 0.0
        %1333 = vmatprep.subr.mxu0 0.0
        %1334 = vmatpush1.msra.mxu0 0.0
        %1335 = vmatprep.subr.mxu0 0.0
        %1336 = vmatpush1.msra.mxu0 0.0
        %1337 = vmatprep.subr.mxu0 0.0
        %1338 = vmatpush1.msra.mxu0 0.0
        %1339 = vmatprep.subr.mxu0 0.0
        %1340 = vmatpush1.msra.mxu0 0.0
        %1341 = vmatprep.subr.mxu0 0.0
        %1342 = vmatpush1.msra.mxu0 0.0
        %1343 = vmatprep.subr.mxu0 %v1164
        %1344 = vmatpush1.msra.mxu0 %v1163
        %1345 = vmatprep.subr.mxu0 %v1156
        %1346 = vmatpush1.msra.mxu0 %v1155
        %1347 = vmatprep.subr.mxu0 %v1148
        %1348 = vmatpush1.msra.mxu0 %v1147
        %1349 = vmatprep.subr.mxu0 %v1140
        %1350 = vmatpush1.msra.mxu0 %v1139
        %1351 = vmatprep.subr.mxu0 0.0
        %1352 = vmatpush2.msra.mxu0 0.0
        %1353 = vmatprep.subr.mxu0 0.0
        %1354 = vmatpush2.msra.mxu0 0.0
        %1355 = vmatprep.subr.mxu0 0.0
        %1356 = vmatpush2.msra.mxu0 0.0
        %1357 = vmatprep.subr.mxu0 0.0
        %1358 = vmatpush2.msra.mxu0 0.0
        %1359 = vmatprep.subr.mxu0 0.0
        %1360 = vmatpush2.msra.mxu0 0.0
        %1361 = vmatprep.subr.mxu0 0.0
        %1362 = vmatpush2.msra.mxu0 0.0
        %1363 = vmatprep.subr.mxu0 0.0
        %1364 = vmatpush2.msra.mxu0 0.0
        %1365 = vmatprep.subr.mxu0 0.0
        %1366 = vmatpush2.msra.mxu0 0.0
        %1367 = vmatprep.subr.mxu0 0.0
        %1368 = vmatpush2.msra.mxu0 0.0
        %1369 = vmatprep.subr.mxu0 0.0
        %1370 = vmatpush2.msra.mxu0 0.0
        %1371 = vmatprep.subr.mxu0 0.0
        %1372 = vmatpush2.msra.mxu0 0.0
        %1373 = vmatprep.subr.mxu0 0.0
        %1374 = vmatpush2.msra.mxu0 0.0
        %1375 = vmatprep.subr.mxu0 0.0
        %1376 = vmatpush2.msra.mxu0 0.0
        %1377 = vmatprep.subr.mxu0 0.0
        %1378 = vmatpush2.msra.mxu0 0.0
        %1379 = vmatprep.subr.mxu0 0.0
        %1380 = vmatpush2.msra.mxu0 0.0
        %1381 = vmatprep.subr.mxu0 0.0
        %1382 = vmatpush2.msra.mxu0 0.0
        %1383 = vmatprep.mubr.f32.mxu0 0.0
        %1384 = vmatmul.mubr.f32.gmra.mxu0 %v1175
        %v1385 = vpop.f32.mrf.mxu0
        %v1386 = vadd.f32 %v1172, %v1385
        %v1387 = vpop.f32.mrf.mxu0
        %v1388 = vadd.f32 %v1172, %v1387
        %1389 = vdwg.mxu0
        %1390 = vmatprep.subr.mxu0 0.0
        %1391 = vmatpush1.msra.mxu0 0.0
        %1392 = vmatprep.subr.mxu0 0.0
        %1393 = vmatpush1.msra.mxu0 0.0
        %1394 = vmatprep.subr.mxu0 0.0
        %1395 = vmatpush1.msra.mxu0 0.0
        %1396 = vmatprep.subr.mxu0 0.0
        %1397 = vmatpush1.msra.mxu0 0.0
        %1398 = vmatprep.subr.mxu0 0.0
        %1399 = vmatpush1.msra.mxu0 0.0
        %1400 = vmatprep.subr.mxu0 0.0
        %1401 = vmatpush1.msra.mxu0 0.0
        %1402 = vmatprep.subr.mxu0 0.0
        %1403 = vmatpush1.msra.mxu0 0.0
        %1404 = vmatprep.subr.mxu0 0.0
        %1405 = vmatpush1.msra.mxu0 0.0
        %1406 = vmatprep.subr.mxu0 0.0
        %1407 = vmatpush1.msra.mxu0 0.0
        %1408 = vmatprep.subr.mxu0 0.0
        %1409 = vmatpush1.msra.mxu0 0.0
        %1410 = vmatprep.subr.mxu0 0.0
        %1411 = vmatpush1.msra.mxu0 0.0
        %1412 = vmatprep.subr.mxu0 0.0
        %1413 = vmatpush1.msra.mxu0 0.0
        %1414 = vmatprep.subr.mxu0 %v1166
        %1415 = vmatpush1.msra.mxu0 %v1165
        %1416 = vmatprep.subr.mxu0 %v1158
        %1417 = vmatpush1.msra.mxu0 %v1157
        %1418 = vmatprep.subr.mxu0 %v1150
        %1419 = vmatpush1.msra.mxu0 %v1149
        %1420 = vmatprep.subr.mxu0 %v1142
        %1421 = vmatpush1.msra.mxu0 %v1141
        %1422 = vmatprep.subr.mxu0 0.0
        %1423 = vmatpush2.msra.mxu0 0.0
        %1424 = vmatprep.subr.mxu0 0.0
        %1425 = vmatpush2.msra.mxu0 0.0
        %1426 = vmatprep.subr.mxu0 0.0
        %1427 = vmatpush2.msra.mxu0 0.0
        %1428 = vmatprep.subr.mxu0 0.0
        %1429 = vmatpush2.msra.mxu0 0.0
        %1430 = vmatprep.subr.mxu0 0.0
        %1431 = vmatpush2.msra.mxu0 0.0
        %1432 = vmatprep.subr.mxu0 0.0
        %1433 = vmatpush2.msra.mxu0 0.0
        %1434 = vmatprep.subr.mxu0 0.0
        %1435 = vmatpush2.msra.mxu0 0.0
        %1436 = vmatprep.subr.mxu0 0.0
        %1437 = vmatpush2.msra.mxu0 0.0
        %1438 = vmatprep.subr.mxu0 0.0
        %1439 = vmatpush2.msra.mxu0 0.0
        %1440 = vmatprep.subr.mxu0 0.0
        %1441 = vmatpush2.msra.mxu0 0.0
        %1442 = vmatprep.subr.mxu0 0.0
        %1443 = vmatpush2.msra.mxu0 0.0
        %1444 = vmatprep.subr.mxu0 0.0
        %1445 = vmatpush2.msra.mxu0 0.0
        %1446 = vmatprep.subr.mxu0 0.0
        %1447 = vmatpush2.msra.mxu0 0.0
        %1448 = vmatprep.subr.mxu0 0.0
        %1449 = vmatpush2.msra.mxu0 0.0
        %1450 = vmatprep.subr.mxu0 0.0
        %1451 = vmatpush2.msra.mxu0 0.0
        %1452 = vmatprep.subr.mxu0 0.0
        %1453 = vmatpush2.msra.mxu0 0.0
        %1454 = vmatprep.mubr.f32.mxu0 0.0
        %1455 = vmatmul.mubr.f32.gmra.mxu0 %v1175
        %v1456 = vpop.f32.mrf.mxu0
        %v1457 = vadd.f32 %v1172, %v1456
        %v1458 = vpop.f32.mrf.mxu0
        %v1459 = vadd.f32 %v1172, %v1458
        %1460 = vdwg.mxu0
        %v1469 = vcombine.low %v1244, %v1246
        %v1470 = vcombine.low %v1315, %v1317
        %v1471 = vcombine.low %v1386, %v1388
        %v1472 = vcombine.low %v1457, %v1459
        %1477 = vst [vmem:[%s272] sm:$0x77] %v1469
        %1478 = vst [vmem:[%s272 + $0x8] sm:$0x77] %v1470
        %1479 = vst [vmem:[%s272 + $0x10] sm:$0x77] %v1471
        %1480 = vst [vmem:[%s272 + $0x18] sm:$0x77] %v1472
        %s1481 = sand.u32 %s181, 1
        %s1482 = scalar_lea.sflag [#allocation3], %s1481
        %s1483 = sand.u32 %s181, 1
        %s1484 = smul.addr %s1483, 32
        %s1485 = scalar_lea.vmem [#allocation2], %s1484
        // Predicated region
        $region49: #{tpu_custom_call.1} parent=47 // pred_check
          %p1486 = pneg %p191
        $region50: #{tpu_custom_call.1} parent=47 // pred_check_branch
          %1488 = sbr.rel (%p1486) target = $region52
        $region51: #{tpu_custom_call.1} parent=47 // pred_region
          %s1489 = smul.u32 8, %s21
          %s1491 = ssub.s32 512, 512
          %1492 = vsyncadd %s1482, %s1491
          %s1493 = smul.addr %s1489, 64
          %s1494 = scalar_lea.hbm %s7, %s1493
          %s1496 = sshll.u32 %s1485, 4
          %s1497 = int_to_ptr.vmem [resolvable:$true] %s1496
          %1499 = dma.vmem_to_hbm [thread:$0]  %s1497, 512, %s1494, %s1482
        $region52: #{tpu_custom_call.1} parent=47 // pred_fallthru
          _
      $region48: #{tpu_custom_call.1} parent=5 // pred_fallthru
        _
      %p1500 = scmp.le.s32.totalorder 2, %s16
      // Predicated region
      $region53: #{tpu_custom_call.1} parent=5 // pred_check
        %p1501 = pneg %p1500
      $region54: #{tpu_custom_call.1} parent=5 // pred_check_branch
        %1503 = sbr.rel (%p1501) target = $region56
      $region55: #{tpu_custom_call.1} parent=5 // pred_region
        %s1504 = ssub.s32 %s16, 2
        // Predicated region
        $region57: #{tpu_custom_call.1} parent=55 // pred_check
          %p1505 = pneg %p197
        $region58: #{tpu_custom_call.1} parent=55 // pred_check_branch
          %1507 = sbr.rel (%p1505) target = $region60
        $region59: #{tpu_custom_call.1} parent=55 // pred_region
          %s1508 = sand.u32 %s182, 1
          %s1509 = scalar_lea.sflag [#allocation3], %s1508
          %s1510 = sand.u32 %s182, 1
          %s1511 = smul.addr %s1510, 32
          %s1512 = scalar_lea.vmem [#allocation2], %s1511
          %1513 = dma.done %s1509, 512
        $region60: #{tpu_custom_call.1} parent=55 // pred_fallthru
          _
      $region56: #{tpu_custom_call.1} parent=5 // pred_fallthru
        _
    $region6: #{tpu_custom_call.1} parent=1 // loop_footer
      %s20 = sadd.s32 1, %s16
    $region7: #{tpu_custom_call.1} parent=1 // loop_footer_branch
      %15 = sbr.rel target = $region3
    $region8: #{tpu_custom_call.1} parent=1 // loop_exit
      _
    %1514 = vsyncpa [#allocation3], 1
    %s1515 = scalar_lea.sflag [#allocation3], 1
    %1516 = vsyncpa %s1515, 1

</llo_original>
